<compile_context>
chip_gen: v7x
topology: tpu7x:2x2x1
jax: 0.10.0
libtpu: 0.0.40
codegen_flags: <defaults>
</compile_context>

<pallas_src>
import math

import jax
import jax.numpy as jnp
from jax.experimental import pallas as pl
from jax.experimental.pallas import tpu as pltpu

# ---------------- model dims (small, consistent with the module) -------------
B = 2            # batch
T = 8            # query / self sequence length
S = 8            # key-memory sequence length
D = 32           # model size
H = 4            # attention heads
DK = D // H      # per-head dim
F = 64           # positionwise feed-forward hidden dim
TK = T + S       # concatenated key length
LANE = 128       # lane width for the packed vector slab

EPS = 1e-12                                  # espnet LayerNorm eps
NEG = float(jnp.finfo(jnp.float32).min)      # masked_fill value
FF_SCALE = 0.5                               # macaron FF present -> 0.5

# Row indices inside the packed (N_VEC_ROWS, 128) vector slab.
(ROW_LN_MAC_G, ROW_LN_MAC_B, ROW_LN_MHA_G, ROW_LN_MHA_B,
 ROW_LN_FF_G, ROW_LN_FF_B, ROW_BO, ROW_B2M, ROW_B2,
 ROW_BQKV, ROW_B1M, ROW_B1, N_VEC_ROWS) = range(13)


# =============================== kernel =====================================
def make_layer_kernel(bb, t_q, t_m, d, n_heads, f):
    """Whole EncoderLayerXL forward for a block of `bb` batch elements."""
    dk = d // n_heads
    t_k = t_q + t_m

    def kernel(x_ref, km_ref, mask_ref, vec_ref, wqkv_ref, wo_ref,
               w1s_ref, w2s_ref, out_ref):
        f32 = jnp.float32
        x = x_ref[...]                  # (bb, t_q, d)
        km = km_ref[...]                # (bb, t_m, d)
        mask_f = mask_ref[...]          # (bb, 1, t_k) float 0/1 over [km, self]

        # ---- unpack the small-vector slab (one DMA for all 12 vectors) ------
        vecs = vec_ref[...]                                        # (12, 128)
        g_mac = vecs[ROW_LN_MAC_G:ROW_LN_MAC_G + 1, :d]
        b_mac = vecs[ROW_LN_MAC_B:ROW_LN_MAC_B + 1, :d]
        g_mha = vecs[ROW_LN_MHA_G:ROW_LN_MHA_G + 1, :d]
        b_mha = vecs[ROW_LN_MHA_B:ROW_LN_MHA_B + 1, :d]
        g_ff = vecs[ROW_LN_FF_G:ROW_LN_FF_G + 1, :d]
        b_ff = vecs[ROW_LN_FF_B:ROW_LN_FF_B + 1, :d]
        bo = vecs[ROW_BO:ROW_BO + 1, :d]
        b2m = vecs[ROW_B2M:ROW_B2M + 1, :d]
        b2 = vecs[ROW_B2:ROW_B2 + 1, :d]
        bqkv = vecs[ROW_BQKV:ROW_BQKV + 1, :3 * d]
        b1m = vecs[ROW_B1M:ROW_B1M + 1, :f]
        b1 = vecs[ROW_B1:ROW_B1 + 1, :f]

        # FFN matrices (packed slabs, static slices)
        w1m = w1s_ref[:, 0:f]
        w1f = w1s_ref[:, f:2 * f]
        w2m = w2s_ref[0:f, :]
        w2f = w2s_ref[f:2 * f, :]

        def layer_norm(v, g, b):
            mu = jnp.mean(v, axis=-1, keepdims=True)
            c = v - mu
            var = jnp.mean(c * c, axis=-1, keepdims=True)
            return c * jax.lax.rsqrt(var + EPS) * g + b

        def ffn2(v2, w1, b1v, w2, b2v):
            # v2: (bb*t, d) -> one (bb*t, d)@(d, f) and one (bb*t, f)@(f, d)
            h = jnp.maximum(
                jnp.dot(v2, w1, preferred_element_type=f32) + b1v, 0.0)
            return jnp.dot(h, w2, preferred_element_type=f32) + b2v

        # ---------------- macaron feed-forward (pre-LN) ----------------------
        xm = layer_norm(x, g_mac, b_mac)
        ffm = ffn2(xm.reshape(bb * t_q, d), w1m, b1m, w2m, b2m)
        x = x + FF_SCALE * ffm.reshape(bb, t_q, d)

        # ---------------- multi-head self-attention with key memory ----------
        xn = layer_norm(x, g_mha, b_mha)

        # Key memory (raw, not normalized by this layer - matches the spec)
        # is PREPENDED to the self keys/values (Transformer-XL convention).
        # TODO(synk): exact key_memory ordering / block_len (bl) interleaving
        # live inside the (unprovided) XL attention module.
        seq = jnp.concatenate([km, xn], axis=1)                    # (bb, t_k, d)

        # One fused 2-D QKV projection (scale already folded into Wq columns).
        qkv = jnp.dot(seq.reshape(bb * t_k, d), wqkv_ref[...],
                      preferred_element_type=f32) + bqkv           # (bb*t_k, 3d)
        qkv = qkv.reshape(bb, t_k, 3 * d)

        bias = (1.0 - mask_f) * NEG                                # (bb, 1, t_k)

        # Per-head batched score/context matmuls (K=dk is intrinsic; static
        # lane slices of the fused qkv result, no head-major weight broadcast).
        ctx_heads = []
        for hh in range(n_heads):
            lo = hh * dk
            qh = qkv[:, t_m:, lo:lo + dk]                          # (bb, t_q, dk)
            kh = qkv[:, :, d + lo:d + lo + dk]                     # (bb, t_k, dk)
            vh = qkv[:, :, 2 * d + lo:2 * d + lo + dk]             # (bb, t_k, dk)
            s = jnp.einsum('bqd,bkd->bqk', qh, kh,
                           preferred_element_type=f32) + bias      # masked_fill
            s = s - jnp.max(s, axis=-1, keepdims=True)
            p = jnp.exp(s)
            p = p * pl.reciprocal(jnp.sum(p, axis=-1, keepdims=True),
                                  approx=True)                     # softmax
            p = p * mask_f                                         # masked_fill(0)
            ctx_heads.append(jnp.einsum('bqk,bkd->bqd', p, vh,
                                        preferred_element_type=f32))
        ctx = jnp.concatenate(ctx_heads, axis=-1)                  # (bb, t_q, d)

        # Single fused output projection.
        att = jnp.dot(ctx.reshape(bb * t_q, d), wo_ref[...],
                      preferred_element_type=f32) + bo
        x = x + att.reshape(bb, t_q, d)                            # residual

        # ---------------- final feed-forward (pre-LN, ff_scale=0.5) ----------
        xf = layer_norm(x, g_ff, b_ff)
        fff = ffn2(xf.reshape(bb * t_q, d), w1f, b1, w2f, b2)
        x = x + FF_SCALE * fff.reshape(bb, t_q, d)

        # conv_module is None -> no norm_conv / norm_final.
        out_ref[...] = x

    return kernel


# ========================= weight prep (hoisted) =============================
def prepare_weights(params):
    """One-time repack of the layer weights into a few DMA-friendly slabs.

    Done once outside the per-call path; mathematically identical to the
    separate Wq/Wk/Wv/Wo linears of espnet MultiHeadedAttention (with the
    1/sqrt(dk) score scale folded into Wq / bq).
    """
    scale = 1.0 / math.sqrt(DK)
    wqkv = jnp.concatenate(
        [params["wq"] * scale, params["wk"], params["wv"]], axis=1)    # (D, 3D)
    bqkv = jnp.concatenate(
        [params["bq"] * scale, params["bk"], params["bv"]], axis=1)    # (1, 3D)

    def row(v):
        v = v.reshape(1, -1).astype(jnp.float32)
        return jnp.pad(v, ((0, 0), (0, LANE - v.shape[1])))

    vecs = jnp.concatenate([
        row(params["ln_mac_g"]), row(params["ln_mac_b"]),
        row(params["ln_mha_g"]), row(params["ln_mha_b"]),
        row(params["ln_ff_g"]), row(params["ln_ff_b"]),
        row(params["bo"]), row(params["b2m"]), row(params["b2"]),
        row(bqkv), row(params["b1m"]), row(params["b1"]),
    ], axis=0)                                                         # (12, 128)

    return {
        "vecs": vecs,
        "wqkv": wqkv,                                                  # (D, 3D)
        "wo": params["wo"],                                            # (D, D)
        "w1s": jnp.concatenate([params["w1m"], params["w1"]], axis=1),  # (D, 2F)
        "w2s": jnp.concatenate([params["w2m"], params["w2"]], axis=0),  # (2F, D)
    }


def _grid_steps(b):
    """Split the batch across TensorCores on v7x; fold it on single-TC chips."""
    try:
        kind = jax.devices()[0].device_kind.lower()
    except Exception:
        kind = ""
    n_cores = 2 if ("v7" in kind or "7x" in kind) else 1
    return n_cores if (n_cores > 1 and b % n_cores == 0) else 1


# =============================== wrapper =====================================
def encoder_layer_xl_forward(packed, x_input, mask, km=None, km_mask=None,
                             bl=None, cache=None):
    """Mirrors EncoderLayerXL.forward for the configuration described above."""
    x, pos_emb = x_input
    if pos_emb is None:
        raise ValueError("position embedding is None")
    assert cache is None  # TODO(synk): cache (incremental decoding) path not implemented.
    assert km is not None and km_mask is not None  # TODO(synk): km=None plain self-attn path not exercised.
    # TODO(synk): `bl` (block_len) is threaded through untouched; its use inside
    # the XL attention / conv module is not defined by the provided code.

    b, t, d = x.shape
    s = km.shape[1]
    t_k = t + s

    # Combined key mask: [key_memory_mask, self_mask] (memory prepended).
    comb_mask = jnp.concatenate([km_mask, mask], axis=-1).astype(jnp.float32)

    n_steps = _grid_steps(b)
    bb = b // n_steps

    kernel = make_layer_kernel(bb, t, s, d, H, F)
    weights = [packed["vecs"], packed["wqkv"], packed["wo"],
               packed["w1s"], packed["w2s"]]

    in_specs = [
        pl.BlockSpec((bb, t, d), lambda i: (i, 0, 0)),      # x
        pl.BlockSpec((bb, s, d), lambda i: (i, 0, 0)),      # key memory
        pl.BlockSpec((bb, 1, t_k), lambda i: (i, 0, 0)),    # combined key mask
    ] + [
        # Weight slabs: full-array blocks, constant index_map -> DMA'd once,
        # resident in VMEM across grid steps.
        pl.BlockSpec(w.shape, lambda i, r=w.ndim: (0,) * r) for w in weights
    ]

    out = pl.pallas_call(
        kernel,
        out_shape=jax.ShapeDtypeStruct((b, t, d), jnp.float32),
        grid=(n_steps,),
        in_specs=in_specs,
        out_specs=pl.BlockSpec((bb, t, d), lambda i: (i, 0, 0)),
        compiler_params=pltpu.CompilerParams(
            dimension_semantics=("parallel",)),
    )(x, km, comb_mask, *weights)

    return (out, pos_emb), mask, None, None, bl


# ============================ pure-JAX reference =============================
def reference_forward(params, x, mask, km, km_mask):
    """Straightforward JAX port of the PyTorch forward (same config)."""
    def layer_norm(v, g, b):
        mu = jnp.mean(v, axis=-1, keepdims=True)
        c = v - mu
        var = jnp.mean(c * c, axis=-1, keepdims=True)
        return c * jax.lax.rsqrt(var + EPS) * g + b

    def ffn(v, w1, b1, w2, b2):
        return jnp.maximum(v @ w1 + b1, 0.0) @ w2 + b2

    # macaron FF
    xm = layer_norm(x, params["ln_mac_g"], params["ln_mac_b"])
    x = x + FF_SCALE * ffn(xm, params["w1m"], params["b1m"],
                           params["w2m"], params["b2m"])
    # MHA with key memory prepended
    xn = layer_norm(x, params["ln_mha_g"], params["ln_mha_b"])
    kv_in = jnp.concatenate([km, xn], axis=1)                    # (B, TK, D)
    q = xn @ params["wq"] + params["bq"]
    k = kv_in @ params["wk"] + params["bk"]
    v = kv_in @ params["wv"] + params["bv"]
    b, t, _ = x.shape
    tk = kv_in.shape[1]
    q4 = q.reshape(b, t, H, DK)
    k4 = k.reshape(b, tk, H, DK)
    v4 = v.reshape(b, tk, H, DK)
    scores = jnp.einsum('bqhd,bkhd->bhqk', q4, k4) / math.sqrt(DK)
    mask_f = jnp.concatenate([km_mask, mask], axis=-1)[:, :, None, :]  # (B,1,1,TK)
    scores = jnp.where(mask_f > 0.5, scores, NEG)
    p = jax.nn.softmax(scores, axis=-1)
    p = jnp.where(mask_f > 0.5, p, 0.0)
    ctx = jnp.einsum('bhqk,bkhd->bqhd', p, v4).reshape(b, t, D)
    x = x + (ctx @ params["wo"] + params["bo"])
    # final FF
    xf = layer_norm(x, params["ln_ff_g"], params["ln_ff_b"])
    x = x + FF_SCALE * ffn(xf, params["w1"], params["b1"],
                           params["w2"], params["b2"])
    return x


# =============================== params ======================================
def init_params(key):
    ks = jax.random.split(key, 22)

    def w(k, shape, s=0.05):
        return s * jax.random.normal(k, shape, jnp.float32)

    return {
        "ln_mac_g": 1.0 + w(ks[0], (1, D), 0.1), "ln_mac_b": w(ks[1], (1, D), 0.1),
        "ln_mha_g": 1.0 + w(ks[2], (1, D), 0.1), "ln_mha_b": w(ks[3], (1, D), 0.1),
        "ln_ff_g": 1.0 + w(ks[4], (1, D), 0.1), "ln_ff_b": w(ks[5], (1, D), 0.1),
        "wq": w(ks[6], (D, D)), "bq": w(ks[7], (1, D), 0.02),
        "wk": w(ks[8], (D, D)), "bk": w(ks[9], (1, D), 0.02),
        "wv": w(ks[10], (D, D)), "bv": w(ks[11], (1, D), 0.02),
        "wo": w(ks[12], (D, D)), "bo": w(ks[13], (1, D), 0.02),
        "w1m": w(ks[14], (D, F)), "b1m": w(ks[15], (1, F), 0.02),
        "w2m": w(ks[16], (F, D)), "b2m": w(ks[17], (1, D), 0.02),
        "w1": w(ks[18], (D, F)), "b1": w(ks[19], (1, F), 0.02),
        "w2": w(ks[20], (F, D)), "b2": w(ks[21], (1, D), 0.02),
    }


# ================================ main =======================================
if __name__ == "__main__":
    key = jax.random.PRNGKey(0)
    kx, ky, kp = jax.random.split(key, 3)

    x = jax.random.normal(kx, (B, T, D), jnp.float32)
    km = jax.random.normal(ky, (B, S, D), jnp.float32)
    pos_emb = 0.1 * jnp.ones((1, T, D), jnp.float32)   # required non-None; passthrough only

    # Partially padded masks to exercise the masking path.
    x_len = jnp.array([T, T - 2])
    km_len = jnp.array([S, S - 3])
    mask = (jnp.arange(T)[None, None, :] < x_len[:, None, None]).astype(jnp.float32)
    km_mask = (jnp.arange(S)[None, None, :] < km_len[:, None, None]).astype(jnp.float32)

    params = init_params(kp)
    packed = prepare_weights(params)   # hoisted out of the per-call hot path

    (out, pe_out), mask_out, _, _, bl_out = encoder_layer_xl_forward(
        packed, (x, pos_emb), mask, km=km, km_mask=km_mask, bl=4)
    out = jax.block_until_ready(out)

    assert out.shape == (B, T, D)
    assert bool(jnp.all(jnp.isfinite(out)))

    # Numerical check against a pure-JAX reference of the same forward.
    with jax.default_matmul_precision("highest"):
        ref = reference_forward(params, x, mask, km, km_mask)
    max_err = float(jnp.max(jnp.abs(out - ref)))
    assert bool(jnp.allclose(out, ref, atol=2e-2, rtol=2e-2)), max_err

    print("KERNEL_OK")
</pallas_src>

<mosaic_0001>
module attributes {stable_mosaic.version = 11 : i64} {
  func.func @kernel(%arg0: i32, %arg1: memref<2x8x32xf32, #tpu.memory_space<vmem>>, %arg2: memref<2x8x32xf32, #tpu.memory_space<vmem>>, %arg3: memref<2x1x16xf32, #tpu.memory_space<vmem>>, %arg4: memref<12x128xf32, #tpu.memory_space<vmem>>, %arg5: memref<32x96xf32, #tpu.memory_space<vmem>>, %arg6: memref<32x32xf32, #tpu.memory_space<vmem>>, %arg7: memref<32x128xf32, #tpu.memory_space<vmem>>, %arg8: memref<128x32xf32, #tpu.memory_space<vmem>>, %arg9: memref<2x8x32xf32, #tpu.memory_space<vmem>>) attributes {dimension_semantics = [#tpu.dimension_semantics<parallel>], iteration_bounds = array<i64: 1>, scalar_prefetch = 0 : i64, scratch_operands = 0 : i64, tpu.core_type = #tpu.core_type<tc>, window_params = [{transform_indices = @transform_0, window_bounds = array<i64: 2, 8, 32>}, {transform_indices = @transform_1, window_bounds = array<i64: 2, 8, 32>}, {transform_indices = @transform_2, window_bounds = array<i64: 2, 1, 16>}, {pipeline_mode = #tpu.pipeline_mode<synchronous>, transform_indices = @transform_3, window_bounds = array<i64: 12, 128>}, {pipeline_mode = #tpu.pipeline_mode<synchronous>, transform_indices = @transform_4, window_bounds = array<i64: 32, 96>}, {pipeline_mode = #tpu.pipeline_mode<synchronous>, transform_indices = @transform_5, window_bounds = array<i64: 32, 32>}, {pipeline_mode = #tpu.pipeline_mode<synchronous>, transform_indices = @transform_6, window_bounds = array<i64: 32, 128>}, {pipeline_mode = #tpu.pipeline_mode<synchronous>, transform_indices = @transform_7, window_bounds = array<i64: 128, 32>}, {transform_indices = @transform_8, window_bounds = array<i64: 2, 8, 32>}]} {
    %c0 = arith.constant 0 : index
    %c0_0 = arith.constant 0 : index
    %c0_1 = arith.constant 0 : index
    %0 = vector.load %arg1[%c0, %c0_0, %c0_1] : memref<2x8x32xf32, #tpu.memory_space<vmem>>, vector<2x8x32xf32>
    %c0_2 = arith.constant 0 : index
    %c0_3 = arith.constant 0 : index
    %c0_4 = arith.constant 0 : index
    %1 = vector.load %arg2[%c0_2, %c0_3, %c0_4] : memref<2x8x32xf32, #tpu.memory_space<vmem>>, vector<2x8x32xf32>
    %c0_5 = arith.constant 0 : index
    %c0_6 = arith.constant 0 : index
    %c0_7 = arith.constant 0 : index
    %2 = vector.load %arg3[%c0_5, %c0_6, %c0_7] : memref<2x1x16xf32, #tpu.memory_space<vmem>>, vector<2x1x16xf32>
    %c0_8 = arith.constant 0 : index
    %c0_9 = arith.constant 0 : index
    %3 = vector.load %arg4[%c0_8, %c0_9] : memref<12x128xf32, #tpu.memory_space<vmem>>, vector<12x128xf32>
    %4 = vector.extract_strided_slice %3 {offsets = [0, 0], sizes = [1, 32], strides = [1, 1]} : vector<12x128xf32> to vector<1x32xf32>
    %5 = vector.extract_strided_slice %3 {offsets = [1, 0], sizes = [1, 32], strides = [1, 1]} : vector<12x128xf32> to vector<1x32xf32>
    %6 = vector.extract_strided_slice %3 {offsets = [2, 0], sizes = [1, 32], strides = [1, 1]} : vector<12x128xf32> to vector<1x32xf32>
    %7 = vector.extract_strided_slice %3 {offsets = [3, 0], sizes = [1, 32], strides = [1, 1]} : vector<12x128xf32> to vector<1x32xf32>
    %8 = vector.extract_strided_slice %3 {offsets = [4, 0], sizes = [1, 32], strides = [1, 1]} : vector<12x128xf32> to vector<1x32xf32>
    %9 = vector.extract_strided_slice %3 {offsets = [5, 0], sizes = [1, 32], strides = [1, 1]} : vector<12x128xf32> to vector<1x32xf32>
    %10 = vector.extract_strided_slice %3 {offsets = [6, 0], sizes = [1, 32], strides = [1, 1]} : vector<12x128xf32> to vector<1x32xf32>
    %11 = vector.extract_strided_slice %3 {offsets = [7, 0], sizes = [1, 32], strides = [1, 1]} : vector<12x128xf32> to vector<1x32xf32>
    %12 = vector.extract_strided_slice %3 {offsets = [8, 0], sizes = [1, 32], strides = [1, 1]} : vector<12x128xf32> to vector<1x32xf32>
    %13 = vector.extract_strided_slice %3 {offsets = [9, 0], sizes = [1, 96], strides = [1, 1]} : vector<12x128xf32> to vector<1x96xf32>
    %14 = vector.extract_strided_slice %3 {offsets = [10, 0], sizes = [1, 64], strides = [1, 1]} : vector<12x128xf32> to vector<1x64xf32>
    %15 = vector.extract_strided_slice %3 {offsets = [11, 0], sizes = [1, 64], strides = [1, 1]} : vector<12x128xf32> to vector<1x64xf32>
    %c0_10 = arith.constant 0 : index
    %c0_11 = arith.constant 0 : index
    %16 = vector.load %arg7[%c0_10, %c0_11] : memref<32x128xf32, #tpu.memory_space<vmem>>, vector<32x64xf32>
    %c0_12 = arith.constant 0 : index
    %c64 = arith.constant 64 : index
    %17 = vector.load %arg7[%c0_12, %c64] : memref<32x128xf32, #tpu.memory_space<vmem>>, vector<32x64xf32>
    %c0_13 = arith.constant 0 : index
    %c0_14 = arith.constant 0 : index
    %18 = vector.load %arg8[%c0_13, %c0_14] : memref<128x32xf32, #tpu.memory_space<vmem>>, vector<64x32xf32>
    %c64_15 = arith.constant 64 : index
    %c0_16 = arith.constant 0 : index
    %19 = vector.load %arg8[%c64_15, %c0_16] : memref<128x32xf32, #tpu.memory_space<vmem>>, vector<64x32xf32>
    %cst = arith.constant dense<0.000000e+00> : vector<2x8xf32>
    %20 = vector.multi_reduction <add>, %0, %cst [2] : vector<2x8x32xf32> to vector<2x8xf32>
    %21 = vector.shape_cast %20 : vector<2x8xf32> to vector<2x8x1xf32>
    %cst_17 = arith.constant 3.200000e+01 : f32
    %22 = vector.broadcast %cst_17 : f32 to vector<2x8x1xf32>
    %23 = arith.divf %21, %22 : vector<2x8x1xf32>
    %24 = vector.broadcast %23 : vector<2x8x1xf32> to vector<2x8x32xf32>
    %25 = arith.subf %0, %24 : vector<2x8x32xf32>
    %26 = arith.mulf %25, %25 : vector<2x8x32xf32>
    %cst_18 = arith.constant dense<0.000000e+00> : vector<2x8xf32>
    %27 = vector.multi_reduction <add>, %26, %cst_18 [2] : vector<2x8x32xf32> to vector<2x8xf32>
    %28 = vector.shape_cast %27 : vector<2x8xf32> to vector<2x8x1xf32>
    %cst_19 = arith.constant 3.200000e+01 : f32
    %29 = vector.broadcast %cst_19 : f32 to vector<2x8x1xf32>
    %30 = arith.divf %28, %29 : vector<2x8x1xf32>
    %cst_20 = arith.constant 9.99999996E-13 : f32
    %31 = vector.broadcast %cst_20 : f32 to vector<2x8x1xf32>
    %32 = arith.addf %30, %31 : vector<2x8x1xf32>
    %33 = math.rsqrt %32 : vector<2x8x1xf32>
    %34 = vector.broadcast %33 : vector<2x8x1xf32> to vector<2x8x32xf32>
    %35 = arith.mulf %25, %34 : vector<2x8x32xf32>
    %36 = vector.shape_cast %4 : vector<1x32xf32> to vector<1x1x32xf32>
    %37 = vector.broadcast %36 : vector<1x1x32xf32> to vector<2x8x32xf32>
    %38 = arith.mulf %35, %37 : vector<2x8x32xf32>
    %39 = vector.shape_cast %5 : vector<1x32xf32> to vector<1x1x32xf32>
    %40 = vector.broadcast %39 : vector<1x1x32xf32> to vector<2x8x32xf32>
    %41 = arith.addf %38, %40 : vector<2x8x32xf32>
    %42 = vector.shape_cast %41 : vector<2x8x32xf32> to vector<16x32xf32>
    %cst_21 = arith.constant dense<0.000000e+00> : vector<16x64xf32>
    %43 = tpu.matmul %42, %16, %cst_21 {dimension_numbers = #tpu.dot_dimension_numbers<[1], [0], [0], [1], [0, 0, 1, 1], [], []>} : vector<16x32xf32>, vector<32x64xf32>, vector<16x64xf32> -> vector<16x64xf32>
    %44 = vector.broadcast %14 : vector<1x64xf32> to vector<16x64xf32>
    %45 = arith.addf %43, %44 : vector<16x64xf32>
    %cst_22 = arith.constant 0.000000e+00 : f32
    %46 = vector.broadcast %cst_22 : f32 to vector<16x64xf32>
    %47 = arith.maximumf %45, %46 : vector<16x64xf32>
    %cst_23 = arith.constant dense<0.000000e+00> : vector<16x32xf32>
    %48 = tpu.matmul %47, %18, %cst_23 {dimension_numbers = #tpu.dot_dimension_numbers<[1], [0], [0], [1], [0, 0, 1, 1], [], []>} : vector<16x64xf32>, vector<64x32xf32>, vector<16x32xf32> -> vector<16x32xf32>
    %49 = vector.broadcast %11 : vector<1x32xf32> to vector<16x32xf32>
    %50 = arith.addf %48, %49 : vector<16x32xf32>
    %51 = vector.shape_cast %50 : vector<16x32xf32> to vector<2x8x32xf32>
    %cst_24 = arith.constant 5.000000e-01 : f32
    %52 = vector.broadcast %cst_24 : f32 to vector<2x8x32xf32>
    %53 = arith.mulf %52, %51 : vector<2x8x32xf32>
    %54 = arith.addf %0, %53 : vector<2x8x32xf32>
    %cst_25 = arith.constant dense<0.000000e+00> : vector<2x8xf32>
    %55 = vector.multi_reduction <add>, %54, %cst_25 [2] : vector<2x8x32xf32> to vector<2x8xf32>
    %56 = vector.shape_cast %55 : vector<2x8xf32> to vector<2x8x1xf32>
    %cst_26 = arith.constant 3.200000e+01 : f32
    %57 = vector.broadcast %cst_26 : f32 to vector<2x8x1xf32>
    %58 = arith.divf %56, %57 : vector<2x8x1xf32>
    %59 = vector.broadcast %58 : vector<2x8x1xf32> to vector<2x8x32xf32>
    %60 = arith.subf %54, %59 : vector<2x8x32xf32>
    %61 = arith.mulf %60, %60 : vector<2x8x32xf32>
    %cst_27 = arith.constant dense<0.000000e+00> : vector<2x8xf32>
    %62 = vector.multi_reduction <add>, %61, %cst_27 [2] : vector<2x8x32xf32> to vector<2x8xf32>
    %63 = vector.shape_cast %62 : vector<2x8xf32> to vector<2x8x1xf32>
    %cst_28 = arith.constant 3.200000e+01 : f32
    %64 = vector.broadcast %cst_28 : f32 to vector<2x8x1xf32>
    %65 = arith.divf %63, %64 : vector<2x8x1xf32>
    %cst_29 = arith.constant 9.99999996E-13 : f32
    %66 = vector.broadcast %cst_29 : f32 to vector<2x8x1xf32>
    %67 = arith.addf %65, %66 : vector<2x8x1xf32>
    %68 = math.rsqrt %67 : vector<2x8x1xf32>
    %69 = vector.broadcast %68 : vector<2x8x1xf32> to vector<2x8x32xf32>
    %70 = arith.mulf %60, %69 : vector<2x8x32xf32>
    %71 = vector.shape_cast %6 : vector<1x32xf32> to vector<1x1x32xf32>
    %72 = vector.broadcast %71 : vector<1x1x32xf32> to vector<2x8x32xf32>
    %73 = arith.mulf %70, %72 : vector<2x8x32xf32>
    %74 = vector.shape_cast %7 : vector<1x32xf32> to vector<1x1x32xf32>
    %75 = vector.broadcast %74 : vector<1x1x32xf32> to vector<2x8x32xf32>
    %76 = arith.addf %73, %75 : vector<2x8x32xf32>
    %77 = tpu.concatenate %1, %76 in 1 : vector<2x8x32xf32>, vector<2x8x32xf32> -> vector<2x16x32xf32>
    %78 = vector.shape_cast %77 : vector<2x16x32xf32> to vector<32x32xf32>
    %c0_30 = arith.constant 0 : index
    %c0_31 = arith.constant 0 : index
    %79 = vector.load %arg5[%c0_30, %c0_31] : memref<32x96xf32, #tpu.memory_space<vmem>>, vector<32x96xf32>
    %cst_32 = arith.constant dense<0.000000e+00> : vector<32x96xf32>
    %80 = tpu.matmul %78, %79, %cst_32 {dimension_numbers = #tpu.dot_dimension_numbers<[1], [0], [0], [1], [0, 0, 1, 1], [], []>} : vector<32x32xf32>, vector<32x96xf32>, vector<32x96xf32> -> vector<32x96xf32>
    %81 = vector.broadcast %13 : vector<1x96xf32> to vector<32x96xf32>
    %82 = arith.addf %80, %81 : vector<32x96xf32>
    %83 = vector.shape_cast %82 : vector<32x96xf32> to vector<2x16x96xf32>
    %cst_33 = arith.constant 1.000000e+00 : f32
    %84 = vector.broadcast %cst_33 : f32 to vector<2x1x16xf32>
    %85 = arith.subf %84, %2 : vector<2x1x16xf32>
    %cst_34 = arith.constant -3.40282347E+38 : f32
    %86 = vector.broadcast %cst_34 : f32 to vector<2x1x16xf32>
    %87 = arith.mulf %85, %86 : vector<2x1x16xf32>
    %88 = vector.extract_strided_slice %83 {offsets = [0, 8, 0], sizes = [2, 8, 8], strides = [1, 1, 1]} : vector<2x16x96xf32> to vector<2x8x8xf32>
    %89 = vector.extract_strided_slice %83 {offsets = [0, 0, 32], sizes = [2, 16, 8], strides = [1, 1, 1]} : vector<2x16x96xf32> to vector<2x16x8xf32>
    %90 = vector.extract_strided_slice %83 {offsets = [0, 0, 64], sizes = [2, 16, 8], strides = [1, 1, 1]} : vector<2x16x96xf32> to vector<2x16x8xf32>
    "tpu.trace_start"() <{level = 10 : i32, message = "bqd,bkd->bqk"}> : () -> ()
    %cst_35 = arith.constant dense<0.000000e+00> : vector<2x8x16xf32>
    %91 = tpu.matmul %88, %89, %cst_35 {dimension_numbers = #tpu.dot_dimension_numbers<[2], [2], [1], [1], [0, 0, 0, 1, 1, 1], [0], [0]>} : vector<2x8x8xf32>, vector<2x16x8xf32>, vector<2x8x16xf32> -> vector<2x8x16xf32>
    "tpu.trace_stop"() : () -> ()
    %92 = vector.broadcast %87 : vector<2x1x16xf32> to vector<2x8x16xf32>
    %93 = arith.addf %91, %92 : vector<2x8x16xf32>
    %cst_36 = arith.constant dense<0xFF800000> : vector<2x8xf32>
    %94 = vector.multi_reduction <maximumf>, %93, %cst_36 [2] : vector<2x8x16xf32> to vector<2x8xf32>
    %95 = vector.shape_cast %94 : vector<2x8xf32> to vector<2x8x1xf32>
    %96 = vector.broadcast %95 : vector<2x8x1xf32> to vector<2x8x16xf32>
    %97 = arith.subf %93, %96 : vector<2x8x16xf32>
    %98 = math.exp %97 : vector<2x8x16xf32>
    %cst_37 = arith.constant dense<0.000000e+00> : vector<2x8xf32>
    %99 = vector.multi_reduction <add>, %98, %cst_37 [2] : vector<2x8x16xf32> to vector<2x8xf32>
    %100 = vector.shape_cast %99 : vector<2x8xf32> to vector<2x8x1xf32>
    %101 = tpu.reciprocal %100 {approx = true} : vector<2x8x1xf32> -> vector<2x8x1xf32>
    %102 = vector.broadcast %101 : vector<2x8x1xf32> to vector<2x8x16xf32>
    %103 = arith.mulf %98, %102 : vector<2x8x16xf32>
    %104 = vector.broadcast %2 : vector<2x1x16xf32> to vector<2x8x16xf32>
    %105 = arith.mulf %103, %104 : vector<2x8x16xf32>
    "tpu.trace_start"() <{level = 10 : i32, message = "bqk,bkd->bqd"}> : () -> ()
    %cst_38 = arith.constant dense<0.000000e+00> : vector<2x8x8xf32>
    %106 = tpu.matmul %105, %90, %cst_38 {dimension_numbers = #tpu.dot_dimension_numbers<[2], [1], [1], [2], [0, 0, 0, 1, 1, 2], [0], [0]>} : vector<2x8x16xf32>, vector<2x16x8xf32>, vector<2x8x8xf32> -> vector<2x8x8xf32>
    "tpu.trace_stop"() : () -> ()
    %107 = vector.extract_strided_slice %83 {offsets = [0, 8, 8], sizes = [2, 8, 8], strides = [1, 1, 1]} : vector<2x16x96xf32> to vector<2x8x8xf32>
    %108 = vector.extract_strided_slice %83 {offsets = [0, 0, 40], sizes = [2, 16, 8], strides = [1, 1, 1]} : vector<2x16x96xf32> to vector<2x16x8xf32>
    %109 = vector.extract_strided_slice %83 {offsets = [0, 0, 72], sizes = [2, 16, 8], strides = [1, 1, 1]} : vector<2x16x96xf32> to vector<2x16x8xf32>
    "tpu.trace_start"() <{level = 10 : i32, message = "bqd,bkd->bqk"}> : () -> ()
    %cst_39 = arith.constant dense<0.000000e+00> : vector<2x8x16xf32>
    %110 = tpu.matmul %107, %108, %cst_39 {dimension_numbers = #tpu.dot_dimension_numbers<[2], [2], [1], [1], [0, 0, 0, 1, 1, 1], [0], [0]>} : vector<2x8x8xf32>, vector<2x16x8xf32>, vector<2x8x16xf32> -> vector<2x8x16xf32>
    "tpu.trace_stop"() : () -> ()
    %111 = vector.broadcast %87 : vector<2x1x16xf32> to vector<2x8x16xf32>
    %112 = arith.addf %110, %111 : vector<2x8x16xf32>
    %cst_40 = arith.constant dense<0xFF800000> : vector<2x8xf32>
    %113 = vector.multi_reduction <maximumf>, %112, %cst_40 [2] : vector<2x8x16xf32> to vector<2x8xf32>
    %114 = vector.shape_cast %113 : vector<2x8xf32> to vector<2x8x1xf32>
    %115 = vector.broadcast %114 : vector<2x8x1xf32> to vector<2x8x16xf32>
    %116 = arith.subf %112, %115 : vector<2x8x16xf32>
    %117 = math.exp %116 : vector<2x8x16xf32>
    %cst_41 = arith.constant dense<0.000000e+00> : vector<2x8xf32>
    %118 = vector.multi_reduction <add>, %117, %cst_41 [2] : vector<2x8x16xf32> to vector<2x8xf32>
    %119 = vector.shape_cast %118 : vector<2x8xf32> to vector<2x8x1xf32>
    %120 = tpu.reciprocal %119 {approx = true} : vector<2x8x1xf32> -> vector<2x8x1xf32>
    %121 = vector.broadcast %120 : vector<2x8x1xf32> to vector<2x8x16xf32>
    %122 = arith.mulf %117, %121 : vector<2x8x16xf32>
    %123 = vector.broadcast %2 : vector<2x1x16xf32> to vector<2x8x16xf32>
    %124 = arith.mulf %122, %123 : vector<2x8x16xf32>
    "tpu.trace_start"() <{level = 10 : i32, message = "bqk,bkd->bqd"}> : () -> ()
    %cst_42 = arith.constant dense<0.000000e+00> : vector<2x8x8xf32>
    %125 = tpu.matmul %124, %109, %cst_42 {dimension_numbers = #tpu.dot_dimension_numbers<[2], [1], [1], [2], [0, 0, 0, 1, 1, 2], [0], [0]>} : vector<2x8x16xf32>, vector<2x16x8xf32>, vector<2x8x8xf32> -> vector<2x8x8xf32>
    "tpu.trace_stop"() : () -> ()
    %126 = vector.extract_strided_slice %83 {offsets = [0, 8, 16], sizes = [2, 8, 8], strides = [1, 1, 1]} : vector<2x16x96xf32> to vector<2x8x8xf32>
    %127 = vector.extract_strided_slice %83 {offsets = [0, 0, 48], sizes = [2, 16, 8], strides = [1, 1, 1]} : vector<2x16x96xf32> to vector<2x16x8xf32>
    %128 = vector.extract_strided_slice %83 {offsets = [0, 0, 80], sizes = [2, 16, 8], strides = [1, 1, 1]} : vector<2x16x96xf32> to vector<2x16x8xf32>
    "tpu.trace_start"() <{level = 10 : i32, message = "bqd,bkd->bqk"}> : () -> ()
    %cst_43 = arith.constant dense<0.000000e+00> : vector<2x8x16xf32>
    %129 = tpu.matmul %126, %127, %cst_43 {dimension_numbers = #tpu.dot_dimension_numbers<[2], [2], [1], [1], [0, 0, 0, 1, 1, 1], [0], [0]>} : vector<2x8x8xf32>, vector<2x16x8xf32>, vector<2x8x16xf32> -> vector<2x8x16xf32>
    "tpu.trace_stop"() : () -> ()
    %130 = vector.broadcast %87 : vector<2x1x16xf32> to vector<2x8x16xf32>
    %131 = arith.addf %129, %130 : vector<2x8x16xf32>
    %cst_44 = arith.constant dense<0xFF800000> : vector<2x8xf32>
    %132 = vector.multi_reduction <maximumf>, %131, %cst_44 [2] : vector<2x8x16xf32> to vector<2x8xf32>
    %133 = vector.shape_cast %132 : vector<2x8xf32> to vector<2x8x1xf32>
    %134 = vector.broadcast %133 : vector<2x8x1xf32> to vector<2x8x16xf32>
    %135 = arith.subf %131, %134 : vector<2x8x16xf32>
    %136 = math.exp %135 : vector<2x8x16xf32>
    %cst_45 = arith.constant dense<0.000000e+00> : vector<2x8xf32>
    %137 = vector.multi_reduction <add>, %136, %cst_45 [2] : vector<2x8x16xf32> to vector<2x8xf32>
    %138 = vector.shape_cast %137 : vector<2x8xf32> to vector<2x8x1xf32>
    %139 = tpu.reciprocal %138 {approx = true} : vector<2x8x1xf32> -> vector<2x8x1xf32>
    %140 = vector.broadcast %139 : vector<2x8x1xf32> to vector<2x8x16xf32>
    %141 = arith.mulf %136, %140 : vector<2x8x16xf32>
    %142 = vector.broadcast %2 : vector<2x1x16xf32> to vector<2x8x16xf32>
    %143 = arith.mulf %141, %142 : vector<2x8x16xf32>
    "tpu.trace_start"() <{level = 10 : i32, message = "bqk,bkd->bqd"}> : () -> ()
    %cst_46 = arith.constant dense<0.000000e+00> : vector<2x8x8xf32>
    %144 = tpu.matmul %143, %128, %cst_46 {dimension_numbers = #tpu.dot_dimension_numbers<[2], [1], [1], [2], [0, 0, 0, 1, 1, 2], [0], [0]>} : vector<2x8x16xf32>, vector<2x16x8xf32>, vector<2x8x8xf32> -> vector<2x8x8xf32>
    "tpu.trace_stop"() : () -> ()
    %145 = vector.extract_strided_slice %83 {offsets = [0, 8, 24], sizes = [2, 8, 8], strides = [1, 1, 1]} : vector<2x16x96xf32> to vector<2x8x8xf32>
    %146 = vector.extract_strided_slice %83 {offsets = [0, 0, 56], sizes = [2, 16, 8], strides = [1, 1, 1]} : vector<2x16x96xf32> to vector<2x16x8xf32>
    %147 = vector.extract_strided_slice %83 {offsets = [0, 0, 88], sizes = [2, 16, 8], strides = [1, 1, 1]} : vector<2x16x96xf32> to vector<2x16x8xf32>
    "tpu.trace_start"() <{level = 10 : i32, message = "bqd,bkd->bqk"}> : () -> ()
    %cst_47 = arith.constant dense<0.000000e+00> : vector<2x8x16xf32>
    %148 = tpu.matmul %145, %146, %cst_47 {dimension_numbers = #tpu.dot_dimension_numbers<[2], [2], [1], [1], [0, 0, 0, 1, 1, 1], [0], [0]>} : vector<2x8x8xf32>, vector<2x16x8xf32>, vector<2x8x16xf32> -> vector<2x8x16xf32>
    "tpu.trace_stop"() : () -> ()
    %149 = vector.broadcast %87 : vector<2x1x16xf32> to vector<2x8x16xf32>
    %150 = arith.addf %148, %149 : vector<2x8x16xf32>
    %cst_48 = arith.constant dense<0xFF800000> : vector<2x8xf32>
    %151 = vector.multi_reduction <maximumf>, %150, %cst_48 [2] : vector<2x8x16xf32> to vector<2x8xf32>
    %152 = vector.shape_cast %151 : vector<2x8xf32> to vector<2x8x1xf32>
    %153 = vector.broadcast %152 : vector<2x8x1xf32> to vector<2x8x16xf32>
    %154 = arith.subf %150, %153 : vector<2x8x16xf32>
    %155 = math.exp %154 : vector<2x8x16xf32>
    %cst_49 = arith.constant dense<0.000000e+00> : vector<2x8xf32>
    %156 = vector.multi_reduction <add>, %155, %cst_49 [2] : vector<2x8x16xf32> to vector<2x8xf32>
    %157 = vector.shape_cast %156 : vector<2x8xf32> to vector<2x8x1xf32>
    %158 = tpu.reciprocal %157 {approx = true} : vector<2x8x1xf32> -> vector<2x8x1xf32>
    %159 = vector.broadcast %158 : vector<2x8x1xf32> to vector<2x8x16xf32>
    %160 = arith.mulf %155, %159 : vector<2x8x16xf32>
    %161 = vector.broadcast %2 : vector<2x1x16xf32> to vector<2x8x16xf32>
    %162 = arith.mulf %160, %161 : vector<2x8x16xf32>
    "tpu.trace_start"() <{level = 10 : i32, message = "bqk,bkd->bqd"}> : () -> ()
    %cst_50 = arith.constant dense<0.000000e+00> : vector<2x8x8xf32>
    %163 = tpu.matmul %162, %147, %cst_50 {dimension_numbers = #tpu.dot_dimension_numbers<[2], [1], [1], [2], [0, 0, 0, 1, 1, 2], [0], [0]>} : vector<2x8x16xf32>, vector<2x16x8xf32>, vector<2x8x8xf32> -> vector<2x8x8xf32>
    "tpu.trace_stop"() : () -> ()
    %164 = tpu.concatenate %106, %125, %144, %163 in 2 : vector<2x8x8xf32>, vector<2x8x8xf32>, vector<2x8x8xf32>, vector<2x8x8xf32> -> vector<2x8x32xf32>
    %165 = vector.shape_cast %164 : vector<2x8x32xf32> to vector<16x32xf32>
    %c0_51 = arith.constant 0 : index
    %c0_52 = arith.constant 0 : index
    %166 = vector.load %arg6[%c0_51, %c0_52] : memref<32x32xf32, #tpu.memory_space<vmem>>, vector<32x32xf32>
    %cst_53 = arith.constant dense<0.000000e+00> : vector<16x32xf32>
    %167 = tpu.matmul %165, %166, %cst_53 {dimension_numbers = #tpu.dot_dimension_numbers<[1], [0], [0], [1], [0, 0, 1, 1], [], []>} : vector<16x32xf32>, vector<32x32xf32>, vector<16x32xf32> -> vector<16x32xf32>
    %168 = vector.broadcast %10 : vector<1x32xf32> to vector<16x32xf32>
    %169 = arith.addf %167, %168 : vector<16x32xf32>
    %170 = vector.shape_cast %169 : vector<16x32xf32> to vector<2x8x32xf32>
    %171 = arith.addf %54, %170 : vector<2x8x32xf32>
    %cst_54 = arith.constant dense<0.000000e+00> : vector<2x8xf32>
    %172 = vector.multi_reduction <add>, %171, %cst_54 [2] : vector<2x8x32xf32> to vector<2x8xf32>
    %173 = vector.shape_cast %172 : vector<2x8xf32> to vector<2x8x1xf32>
    %cst_55 = arith.constant 3.200000e+01 : f32
    %174 = vector.broadcast %cst_55 : f32 to vector<2x8x1xf32>
    %175 = arith.divf %173, %174 : vector<2x8x1xf32>
    %176 = vector.broadcast %175 : vector<2x8x1xf32> to vector<2x8x32xf32>
    %177 = arith.subf %171, %176 : vector<2x8x32xf32>
    %178 = arith.mulf %177, %177 : vector<2x8x32xf32>
    %cst_56 = arith.constant dense<0.000000e+00> : vector<2x8xf32>
    %179 = vector.multi_reduction <add>, %178, %cst_56 [2] : vector<2x8x32xf32> to vector<2x8xf32>
    %180 = vector.shape_cast %179 : vector<2x8xf32> to vector<2x8x1xf32>
    %cst_57 = arith.constant 3.200000e+01 : f32
    %181 = vector.broadcast %cst_57 : f32 to vector<2x8x1xf32>
    %182 = arith.divf %180, %181 : vector<2x8x1xf32>
    %cst_58 = arith.constant 9.99999996E-13 : f32
    %183 = vector.broadcast %cst_58 : f32 to vector<2x8x1xf32>
    %184 = arith.addf %182, %183 : vector<2x8x1xf32>
    %185 = math.rsqrt %184 : vector<2x8x1xf32>
    %186 = vector.broadcast %185 : vector<2x8x1xf32> to vector<2x8x32xf32>
    %187 = arith.mulf %177, %186 : vector<2x8x32xf32>
    %188 = vector.shape_cast %8 : vector<1x32xf32> to vector<1x1x32xf32>
    %189 = vector.broadcast %188 : vector<1x1x32xf32> to vector<2x8x32xf32>
    %190 = arith.mulf %187, %189 : vector<2x8x32xf32>
    %191 = vector.shape_cast %9 : vector<1x32xf32> to vector<1x1x32xf32>
    %192 = vector.broadcast %191 : vector<1x1x32xf32> to vector<2x8x32xf32>
    %193 = arith.addf %190, %192 : vector<2x8x32xf32>
    %194 = vector.shape_cast %193 : vector<2x8x32xf32> to vector<16x32xf32>
    %cst_59 = arith.constant dense<0.000000e+00> : vector<16x64xf32>
    %195 = tpu.matmul %194, %17, %cst_59 {dimension_numbers = #tpu.dot_dimension_numbers<[1], [0], [0], [1], [0, 0, 1, 1], [], []>} : vector<16x32xf32>, vector<32x64xf32>, vector<16x64xf32> -> vector<16x64xf32>
    %196 = vector.broadcast %15 : vector<1x64xf32> to vector<16x64xf32>
    %197 = arith.addf %195, %196 : vector<16x64xf32>
    %cst_60 = arith.constant 0.000000e+00 : f32
    %198 = vector.broadcast %cst_60 : f32 to vector<16x64xf32>
    %199 = arith.maximumf %197, %198 : vector<16x64xf32>
    %cst_61 = arith.constant dense<0.000000e+00> : vector<16x32xf32>
    %200 = tpu.matmul %199, %19, %cst_61 {dimension_numbers = #tpu.dot_dimension_numbers<[1], [0], [0], [1], [0, 0, 1, 1], [], []>} : vector<16x64xf32>, vector<64x32xf32>, vector<16x32xf32> -> vector<16x32xf32>
    %201 = vector.broadcast %12 : vector<1x32xf32> to vector<16x32xf32>
    %202 = arith.addf %200, %201 : vector<16x32xf32>
    %203 = vector.shape_cast %202 : vector<16x32xf32> to vector<2x8x32xf32>
    %cst_62 = arith.constant 5.000000e-01 : f32
    %204 = vector.broadcast %cst_62 : f32 to vector<2x8x32xf32>
    %205 = arith.mulf %204, %203 : vector<2x8x32xf32>
    %206 = arith.addf %171, %205 : vector<2x8x32xf32>
    %c0_63 = arith.constant 0 : index
    %c0_64 = arith.constant 0 : index
    %c0_65 = arith.constant 0 : index
    %207 = vector.load %arg9[%c0_63, %c0_64, %c0_65] : memref<2x8x32xf32, #tpu.memory_space<vmem>>, vector<2x8x32xf32>
    tpu.vector_store %arg9[%c0_63, %c0_64, %c0_65], %206 {strides = array<i32>} : memref<2x8x32xf32, #tpu.memory_space<vmem>>, vector<2x8x32xf32>,
    return
  }
  func.func @transform_0(%arg0: i32) -> (i32, i32, i32) {
    %c0_i32 = arith.constant 0 : i32
    %c0_i32_0 = arith.constant 0 : i32
    %c0_i32_1 = arith.constant 0 : i32
    return %arg0, %c0_i32, %c0_i32_0 : i32, i32, i32
  }
  func.func @transform_1(%arg0: i32) -> (i32, i32, i32) {
    %c0_i32 = arith.constant 0 : i32
    %c0_i32_0 = arith.constant 0 : i32
    %c0_i32_1 = arith.constant 0 : i32
    return %arg0, %c0_i32, %c0_i32_0 : i32, i32, i32
  }
  func.func @transform_2(%arg0: i32) -> (i32, i32, i32) {
    %c0_i32 = arith.constant 0 : i32
    %c0_i32_0 = arith.constant 0 : i32
    %c0_i32_1 = arith.constant 0 : i32
    return %arg0, %c0_i32, %c0_i32_0 : i32, i32, i32
  }
  func.func @transform_3(%arg0: i32) -> (i32, i32) {
    %c0_i32 = arith.constant 0 : i32
    %c0_i32_0 = arith.constant 0 : i32
    %c0_i32_1 = arith.constant 0 : i32
    return %c0_i32, %c0_i32_0 : i32, i32
  }
  func.func @transform_4(%arg0: i32) -> (i32, i32) {
    %c0_i32 = arith.constant 0 : i32
    %c0_i32_0 = arith.constant 0 : i32
    %c0_i32_1 = arith.constant 0 : i32
    return %c0_i32, %c0_i32_0 : i32, i32
  }
  func.func @transform_5(%arg0: i32) -> (i32, i32) {
    %c0_i32 = arith.constant 0 : i32
    %c0_i32_0 = arith.constant 0 : i32
    %c0_i32_1 = arith.constant 0 : i32
    return %c0_i32, %c0_i32_0 : i32, i32
  }
  func.func @transform_6(%arg0: i32) -> (i32, i32) {
    %c0_i32 = arith.constant 0 : i32
    %c0_i32_0 = arith.constant 0 : i32
    %c0_i32_1 = arith.constant 0 : i32
    return %c0_i32, %c0_i32_0 : i32, i32
  }
  func.func @transform_7(%arg0: i32) -> (i32, i32) {
    %c0_i32 = arith.constant 0 : i32
    %c0_i32_0 = arith.constant 0 : i32
    %c0_i32_1 = arith.constant 0 : i32
    return %c0_i32, %c0_i32_0 : i32, i32
  }
  func.func @transform_8(%arg0: i32) -> (i32, i32, i32) {
    %c0_i32 = arith.constant 0 : i32
    %c0_i32_0 = arith.constant 0 : i32
    %c0_i32_1 = arith.constant 0 : i32
    return %arg0, %c0_i32, %c0_i32_0 : i32, i32, i32
  }
}

</mosaic_0001>

<llo_original>
// kernel: tpu_custom_call.1
$region0: #{tpu_custom_call.1}
  #allocation0 [shape = 'u32[]', space=smem, size = 0x4, offset = 0x4, fixed_abs, tag = 'smem constant byte address 0x4 - core index']
  #allocation1 [shape = 'u32[144,128]{1,0:T(1,128)}', space=vmem, size = 0x12000, scoped, tag = 'internal scratch']
  %s0 = inlined_call_operand.vmem [shape: f32[2,8,32], index: 0, kind: input, shape index: {}]
  %s1 = inlined_call_operand.vmem [shape: f32[2,8,32], index: 1, kind: input, shape index: {}]
  %s2 = inlined_call_operand.vmem [shape: f32[2,1,16], index: 2, kind: input, shape index: {}]
  %s3 = inlined_call_operand.vmem [shape: f32[12,128], index: 3, kind: input, shape index: {}]
  %s4 = inlined_call_operand.vmem [shape: f32[32,96], index: 4, kind: input, shape index: {}]
  %s5 = inlined_call_operand.vmem [shape: f32[32,32], index: 5, kind: input, shape index: {}]
  %s6 = inlined_call_operand.vmem [shape: f32[32,128], index: 6, kind: input, shape index: {}]
  %s7 = inlined_call_operand.vmem [shape: f32[128,32], index: 7, kind: input, shape index: {}]
  %s8 = inlined_call_operand.hbm [shape: f32[2,8,32], index: 8, kind: output, shape index: {}]
  %s9 = sld [smem:[#allocation0]]
  $region42: #{tpu_custom_call.1} parent=0
    _
  %s11 = ssub.s32 1, %s9
  %s12 = scalar_select 0, %s11, %s9
  $region1: #{tpu_custom_call.1} parent=0
    #allocation2 [shape = 'u8[8192]{0}', space=vmem, size = 0x2000, scoped, tag = 'output window, operand 0, single buffered']
    #allocation3 [shape = 's32[1]{0}', space=sflag, size = 0x4, scoped, tag = 'scoped memory for tpu_custom_call.1']
    %13 = vsyncpa [#allocation3], 0
    // Predicated region
    $region2: #{tpu_custom_call.1} parent=1 // pred_check
      _
    $region3: #{tpu_custom_call.1} parent=1 // pred_check_branch
      %15 = sbr.rel (0) target = $region5
    $region4: #{tpu_custom_call.1} parent=1 // pred_region
      _
    $region5: #{tpu_custom_call.1} parent=1 // pred_fallthru
      _
    // Predicated region
    $region6: #{tpu_custom_call.1} parent=1 // pred_check
      _
    $region7: #{tpu_custom_call.1} parent=1 // pred_check_branch
      %17 = sbr.rel (0) target = $region9
    $region8: #{tpu_custom_call.1} parent=1 // pred_region
      _
    $region9: #{tpu_custom_call.1} parent=1 // pred_fallthru
      _
    // Predicated region
    $region10: #{tpu_custom_call.1} parent=1 // pred_check
      _
    $region11: #{tpu_custom_call.1} parent=1 // pred_check_branch
      %19 = sbr.rel (0) target = $region13
    $region12: #{tpu_custom_call.1} parent=1 // pred_region
      _
    $region13: #{tpu_custom_call.1} parent=1 // pred_fallthru
      _
    // Predicated region
    $region14: #{tpu_custom_call.1} parent=1 // pred_check
      _
    $region15: #{tpu_custom_call.1} parent=1 // pred_check_branch
      %21 = sbr.rel (0) target = $region17
    $region16: #{tpu_custom_call.1} parent=1 // pred_region
      _
    $region17: #{tpu_custom_call.1} parent=1 // pred_fallthru
      _
    // Predicated region
    $region18: #{tpu_custom_call.1} parent=1 // pred_check
      _
    $region19: #{tpu_custom_call.1} parent=1 // pred_check_branch
      %23 = sbr.rel (0) target = $region21
    $region20: #{tpu_custom_call.1} parent=1 // pred_region
      _
    $region21: #{tpu_custom_call.1} parent=1 // pred_fallthru
      _
    // Predicated region
    $region22: #{tpu_custom_call.1} parent=1 // pred_check
      _
    $region23: #{tpu_custom_call.1} parent=1 // pred_check_branch
      %25 = sbr.rel (0) target = $region25
    $region24: #{tpu_custom_call.1} parent=1 // pred_region
      _
    $region25: #{tpu_custom_call.1} parent=1 // pred_fallthru
      _
    // Predicated region
    $region26: #{tpu_custom_call.1} parent=1 // pred_check
      _
    $region27: #{tpu_custom_call.1} parent=1 // pred_check_branch
      %27 = sbr.rel (0) target = $region29
    $region28: #{tpu_custom_call.1} parent=1 // pred_region
      _
    $region29: #{tpu_custom_call.1} parent=1 // pred_fallthru
      _
    // Predicated region
    $region30: #{tpu_custom_call.1} parent=1 // pred_check
      _
    $region31: #{tpu_custom_call.1} parent=1 // pred_check_branch
      %29 = sbr.rel (0) target = $region33
    $region32: #{tpu_custom_call.1} parent=1 // pred_region
      _
    $region33: #{tpu_custom_call.1} parent=1 // pred_fallthru
      _
    %v30 = vld [vmem:[%s0] sm:$0xff]
    %v31 = vld [vmem:[%s0 + $0x8] sm:$0xff]
    %v32 = vld [vmem:[%s1] sm:$0xff]
    %v33 = vld [vmem:[%s1 + $0x8] sm:$0xff]
    %v34 = vld [vmem:[%s2] sm:$0x1]
    %v35 = vld [vmem:[%s2 + $0x1] sm:$0x1]
    %v36 = vld [vmem:[%s3] sm:$0xff]
    %v37 = vld [vmem:[%s3 + $0x8] sm:$0xf]
    %v38 = vld [vmem:[%s6] sm:$0xff]
    %v39 = vld [vmem:[%s6 + $0x8] sm:$0xff]
    %v40 = vld [vmem:[%s6 + $0x10] sm:$0xff]
    %v41 = vld [vmem:[%s6 + $0x18] sm:$0xff]
    %v42 = vld [vmem:[%s7] sm:$0xff]
    %v43 = vld [vmem:[%s7 + $0x8] sm:$0xff]
    %v44 = vld [vmem:[%s7 + $0x10] sm:$0xff]
    %v45 = vld [vmem:[%s7 + $0x18] sm:$0xff]
    %v46 = vld [vmem:[%s7 + $0x20] sm:$0xff]
    %v47 = vld [vmem:[%s7 + $0x28] sm:$0xff]
    %v48 = vld [vmem:[%s7 + $0x30] sm:$0xff]
    %v49 = vld [vmem:[%s7 + $0x38] sm:$0xff]
    %v50 = vld [vmem:[%s7 + $0x40] sm:$0xff]
    %v51 = vld [vmem:[%s7 + $0x48] sm:$0xff]
    %v52 = vld [vmem:[%s7 + $0x50] sm:$0xff]
    %v53 = vld [vmem:[%s7 + $0x58] sm:$0xff]
    %v54 = vld [vmem:[%s7 + $0x60] sm:$0xff]
    %v55 = vld [vmem:[%s7 + $0x68] sm:$0xff]
    %v56 = vld [vmem:[%s7 + $0x70] sm:$0xff]
    %v57 = vld [vmem:[%s7 + $0x78] sm:$0xff]
    %vm58 = vcmask 261120
    %v59 = vsel %vm58, %v30, 0.0
    %60 = vadd.xlane.f32.xlu0 %v59
    %v61 = vpop.xlane.xlu0 %60
    %v62 = vsel %vm58, %v31, 0.0
    %63 = vadd.xlane.f32.xlu0 %v62
    %v64 = vpop.xlane.xlu0 %63
    %v65 = vrcp.pop 32.0
    %v66 = vmul.f32 %v61, %v65
    %v67 = vmul.f32 %v64, %v65
    %v68 = vsub.f32 %v30, %v66
    %v69 = vsub.f32 %v31, %v67
    %v70 = vmul.f32 %v68, %v68
    %v71 = vmul.f32 %v69, %v69
    %v72 = vsel %vm58, %v70, 0.0
    %73 = vadd.xlane.f32.xlu0 %v72
    %v74 = vpop.xlane.xlu0 %73
    %v75 = vsel %vm58, %v71, 0.0
    %76 = vadd.xlane.f32.xlu0 %v75
    %v77 = vpop.xlane.xlu0 %76
    %v78 = vmul.f32 %v74, %v65
    %v79 = vmul.f32 %v77, %v65
    %v80 = vadd.f32 %v78, 1e-12
    %v81 = vadd.f32 %v79, 1e-12
    %v82 = vrsqrt.pop %v80
    %v83 = vrsqrt.pop %v81
    %v84 = vmul.f32 %v68, %v82
    %v85 = vmul.f32 %v69, %v83
    %v86 = vlaneseq
    %v87 = vshrl.u32 %v86, 7
    %v88 = vsub.s32 0, %v87
    %v89 = vrot.slane %v36, %v88
    %v90 = vmul.f32 %v84, %v89
    %v91 = vmul.f32 %v85, %v89
    %v92 = vlaneseq
    %v93 = vshrl.u32 %v92, 7
    %v94 = vsub.s32 1, %v93
    %v95 = vrot.slane %v36, %v94
    %v96 = vadd.f32 %v90, %v95
    %v97 = vadd.f32 %v91, %v95
    %v98 = vlaneseq
    %v99 = vshrl.u32 %v98, 7
    %v100 = vsub.s32 2, %v99
    %v101 = vrot.slane %v37, %v100
    %v103 = vsel %vm58, %v96, 0
    %v106 = vsel %vm58, %v97, 0
    %108 = vmatprep.subr.mxu0 0.0
    %109 = vmatpush1.msra.mxu0 %v38
    %110 = vmatprep.subr.mxu0 0.0
    %111 = vmatpush1.msra.mxu0 %v39
    %112 = vmatprep.subr.mxu0 0.0
    %113 = vmatpush1.msra.mxu0 %v40
    %114 = vmatprep.subr.mxu0 0.0
    %115 = vmatpush1.msra.mxu0 %v41
    %116 = vmatprep.subr.mxu0 0.0
    %117 = vmatpush1.msra.mxu0 0.0
    %118 = vmatprep.subr.mxu0 0.0
    %119 = vmatpush1.msra.mxu0 0.0
    %120 = vmatprep.subr.mxu0 0.0
    %121 = vmatpush1.msra.mxu0 0.0
    %122 = vmatprep.subr.mxu0 0.0
    %123 = vmatpush1.msra.mxu0 0.0
    %124 = vmatprep.subr.mxu0 0.0
    %125 = vmatpush1.msra.mxu0 0.0
    %126 = vmatprep.subr.mxu0 0.0
    %127 = vmatpush1.msra.mxu0 0.0
    %128 = vmatprep.subr.mxu0 0.0
    %129 = vmatpush1.msra.mxu0 0.0
    %130 = vmatprep.subr.mxu0 0.0
    %131 = vmatpush1.msra.mxu0 0.0
    %132 = vmatprep.subr.mxu0 0.0
    %133 = vmatpush1.msra.mxu0 0.0
    %134 = vmatprep.subr.mxu0 0.0
    %135 = vmatpush1.msra.mxu0 0.0
    %136 = vmatprep.subr.mxu0 0.0
    %137 = vmatpush1.msra.mxu0 0.0
    %138 = vmatprep.subr.mxu0 0.0
    %139 = vmatpush1.msra.mxu0 0.0
    %140 = vmatprep.subr.mxu0 0.0
    %141 = vmatpush1.msra.mxu0 0.0
    %142 = vmatprep.subr.mxu0 0.0
    %143 = vmatpush1.msra.mxu0 0.0
    %144 = vmatprep.subr.mxu0 0.0
    %145 = vmatpush1.msra.mxu0 0.0
    %146 = vmatprep.subr.mxu0 0.0
    %147 = vmatpush1.msra.mxu0 0.0
    %148 = vmatprep.subr.mxu0 0.0
    %149 = vmatpush1.msra.mxu0 0.0
    %150 = vmatprep.subr.mxu0 0.0
    %151 = vmatpush1.msra.mxu0 0.0
    %152 = vmatprep.subr.mxu0 0.0
    %153 = vmatpush1.msra.mxu0 0.0
    %154 = vmatprep.subr.mxu0 0.0
    %155 = vmatpush1.msra.mxu0 0.0
    %156 = vmatprep.subr.mxu0 0.0
    %157 = vmatpush1.msra.mxu0 0.0
    %158 = vmatprep.subr.mxu0 0.0
    %159 = vmatpush1.msra.mxu0 0.0
    %160 = vmatprep.subr.mxu0 0.0
    %161 = vmatpush1.msra.mxu0 0.0
    %162 = vmatprep.subr.mxu0 0.0
    %163 = vmatpush1.msra.mxu0 0.0
    %164 = vmatprep.subr.mxu0 0.0
    %165 = vmatpush1.msra.mxu0 0.0
    %166 = vmatprep.subr.mxu0 0.0
    %167 = vmatpush1.msra.mxu0 0.0
    %168 = vmatprep.subr.mxu0 0.0
    %169 = vmatpush1.msra.mxu0 0.0
    %170 = vmatprep.subr.mxu0 0.0
    %171 = vmatpush1.msra.mxu0 0.0
    %172 = vmatprep.mubr.f32.mxu0 0.0
    %173 = vmatmul.mubr.f32.gmra.mrb[0].mxu0 %v103
    %v174 = vpop.f32.mrb[0].mxu0
    %v175 = vadd.f32 %v101, %v174
    %v176 = vpop.f32.mrb[0].mxu0
    %177 = vmatprep.mubr.f32.mxu0 0.0
    %178 = vmatmul.mubr.f32.gmra.mrb[0].mxu0 %v106
    %v179 = vpop.f32.mrb[0].mxu0
    %v180 = vadd.f32 %v101, %v179
    %v181 = vpop.f32.mrb[0].mxu0
    %182 = vdwg.mxu0
    %v183 = vmax.f32 %v175, 0.0
    %v184 = vmax.f32 %v180, 0.0
    %v185 = vlaneseq
    %v186 = vshrl.u32 %v185, 7
    %v187 = vsub.s32 7, %v186
    %v188 = vrot.slane %v36, %v187
    %vm189 = vcmask 523264
    %v191 = vsel %vm189, %v183, 0
    %v194 = vsel %vm189, %v184, 0
    %196 = vmatprep.subr.mxu0 0.0
    %197 = vmatpush1.msra.mxu0 %v42
    %198 = vmatprep.subr.mxu0 0.0
    %199 = vmatpush1.msra.mxu0 %v43
    %200 = vmatprep.subr.mxu0 0.0
    %201 = vmatpush1.msra.mxu0 %v44
    %202 = vmatprep.subr.mxu0 0.0
    %203 = vmatpush1.msra.mxu0 %v45
    %204 = vmatprep.subr.mxu0 0.0
    %205 = vmatpush1.msra.mxu0 %v46
    %206 = vmatprep.subr.mxu0 0.0
    %207 = vmatpush1.msra.mxu0 %v47
    %208 = vmatprep.subr.mxu0 0.0
    %209 = vmatpush1.msra.mxu0 %v48
    %210 = vmatprep.subr.mxu0 0.0
    %211 = vmatpush1.msra.mxu0 %v49
    %212 = vmatprep.subr.mxu0 0.0
    %213 = vmatpush1.msra.mxu0 0.0
    %214 = vmatprep.subr.mxu0 0.0
    %215 = vmatpush1.msra.mxu0 0.0
    %216 = vmatprep.subr.mxu0 0.0
    %217 = vmatpush1.msra.mxu0 0.0
    %218 = vmatprep.subr.mxu0 0.0
    %219 = vmatpush1.msra.mxu0 0.0
    %220 = vmatprep.subr.mxu0 0.0
    %221 = vmatpush1.msra.mxu0 0.0
    %222 = vmatprep.subr.mxu0 0.0
    %223 = vmatpush1.msra.mxu0 0.0
    %224 = vmatprep.subr.mxu0 0.0
    %225 = vmatpush1.msra.mxu0 0.0
    %226 = vmatprep.subr.mxu0 0.0
    %227 = vmatpush1.msra.mxu0 0.0
    %228 = vmatprep.subr.mxu0 0.0
    %229 = vmatpush1.msra.mxu0 0.0
    %230 = vmatprep.subr.mxu0 0.0
    %231 = vmatpush1.msra.mxu0 0.0
    %232 = vmatprep.subr.mxu0 0.0
    %233 = vmatpush1.msra.mxu0 0.0
    %234 = vmatprep.subr.mxu0 0.0
    %235 = vmatpush1.msra.mxu0 0.0
    %236 = vmatprep.subr.mxu0 0.0
    %237 = vmatpush1.msra.mxu0 0.0
    %238 = vmatprep.subr.mxu0 0.0
    %239 = vmatpush1.msra.mxu0 0.0
    %240 = vmatprep.subr.mxu0 0.0
    %241 = vmatpush1.msra.mxu0 0.0
    %242 = vmatprep.subr.mxu0 0.0
    %243 = vmatpush1.msra.mxu0 0.0
    %244 = vmatprep.subr.mxu0 0.0
    %245 = vmatpush1.msra.mxu0 0.0
    %246 = vmatprep.subr.mxu0 0.0
    %247 = vmatpush1.msra.mxu0 0.0
    %248 = vmatprep.subr.mxu0 0.0
    %249 = vmatpush1.msra.mxu0 0.0
    %250 = vmatprep.subr.mxu0 0.0
    %251 = vmatpush1.msra.mxu0 0.0
    %252 = vmatprep.subr.mxu0 0.0
    %253 = vmatpush1.msra.mxu0 0.0
    %254 = vmatprep.subr.mxu0 0.0
    %255 = vmatpush1.msra.mxu0 0.0
    %256 = vmatprep.subr.mxu0 0.0
    %257 = vmatpush1.msra.mxu0 0.0
    %258 = vmatprep.subr.mxu0 0.0
    %259 = vmatpush1.msra.mxu0 0.0
    %260 = vmatprep.mubr.f32.mxu0 0.0
    %261 = vmatmul.mubr.f32.gmra.mrb[0].mxu0 %v191
    %v262 = vpop.f32.mrb[0].mxu0
    %v263 = vadd.f32 %v188, %v262
    %v264 = vpop.f32.mrb[0].mxu0
    %265 = vmatprep.mubr.f32.mxu0 0.0
    %266 = vmatmul.mubr.f32.gmra.mrb[0].mxu0 %v194
    %v267 = vpop.f32.mrb[0].mxu0
    %v268 = vadd.f32 %v188, %v267
    %v269 = vpop.f32.mrb[0].mxu0
    %270 = vdwg.mxu0
    %v271 = vmul.f32 %v263, 0.5
    %v272 = vmul.f32 %v268, 0.5
    %v273 = vadd.f32 %v30, %v271
    %v274 = vadd.f32 %v31, %v272
    %v275 = vsel %vm58, %v273, 0.0
    %276 = vadd.xlane.f32.xlu0 %v275
    %v277 = vpop.xlane.xlu0 %276
    %v278 = vsel %vm58, %v274, 0.0
    %279 = vadd.xlane.f32.xlu0 %v278
    %v280 = vpop.xlane.xlu0 %279
    %v281 = vmul.f32 %v277, %v65
    %v282 = vmul.f32 %v280, %v65
    %v283 = vsub.f32 %v273, %v281
    %v284 = vsub.f32 %v274, %v282
    %v285 = vmul.f32 %v283, %v283
    %v286 = vmul.f32 %v284, %v284
    %v287 = vsel %vm58, %v285, 0.0
    %288 = vadd.xlane.f32.xlu0 %v287
    %v289 = vpop.xlane.xlu0 %288
    %v290 = vsel %vm58, %v286, 0.0
    %291 = vadd.xlane.f32.xlu0 %v290
    %v292 = vpop.xlane.xlu0 %291
    %v293 = vmul.f32 %v289, %v65
    %v294 = vmul.f32 %v292, %v65
    %v295 = vadd.f32 %v293, 1e-12
    %v296 = vadd.f32 %v294, 1e-12
    %v297 = vrsqrt.pop %v295
    %v298 = vrsqrt.pop %v296
    %v299 = vmul.f32 %v283, %v297
    %v300 = vmul.f32 %v284, %v298
    %v301 = vlaneseq
    %v302 = vshrl.u32 %v301, 7
    %v303 = vsub.s32 2, %v302
    %v304 = vrot.slane %v36, %v303
    %v305 = vmul.f32 %v299, %v304
    %v306 = vmul.f32 %v300, %v304
    %v307 = vlaneseq
    %v308 = vshrl.u32 %v307, 7
    %v309 = vsub.s32 3, %v308
    %v310 = vrot.slane %v36, %v309
    %v311 = vadd.f32 %v305, %v310
    %v312 = vadd.f32 %v306, %v310
    %v313 = vld [vmem:[%s4] sm:$0xff]
    %v314 = vld [vmem:[%s4 + $0x8] sm:$0xff]
    %v315 = vld [vmem:[%s4 + $0x10] sm:$0xff]
    %v316 = vld [vmem:[%s4 + $0x18] sm:$0xff]
    %v317 = vlaneseq
    %v318 = vshrl.u32 %v317, 7
    %v319 = vsub.s32 1, %v318
    %v320 = vrot.slane %v37, %v319
    %v322 = vsel %vm58, %v32, 0
    %v325 = vsel %vm58, %v311, 0
    %v328 = vsel %vm58, %v33, 0
    %v331 = vsel %vm58, %v312, 0
    %333 = vmatprep.subr.mxu0 0.0
    %334 = vmatpush1.msra.mxu0 %v313
    %335 = vmatprep.subr.mxu0 0.0
    %336 = vmatpush1.msra.mxu0 %v314
    %337 = vmatprep.subr.mxu0 0.0
    %338 = vmatpush1.msra.mxu0 %v315
    %339 = vmatprep.subr.mxu0 0.0
    %340 = vmatpush1.msra.mxu0 %v316
    %341 = vmatprep.subr.mxu0 0.0
    %342 = vmatpush1.msra.mxu0 0.0
    %343 = vmatprep.subr.mxu0 0.0
    %344 = vmatpush1.msra.mxu0 0.0
    %345 = vmatprep.subr.mxu0 0.0
    %346 = vmatpush1.msra.mxu0 0.0
    %347 = vmatprep.subr.mxu0 0.0
    %348 = vmatpush1.msra.mxu0 0.0
    %349 = vmatprep.subr.mxu0 0.0
    %350 = vmatpush1.msra.mxu0 0.0
    %351 = vmatprep.subr.mxu0 0.0
    %352 = vmatpush1.msra.mxu0 0.0
    %353 = vmatprep.subr.mxu0 0.0
    %354 = vmatpush1.msra.mxu0 0.0
    %355 = vmatprep.subr.mxu0 0.0
    %356 = vmatpush1.msra.mxu0 0.0
    %357 = vmatprep.subr.mxu0 0.0
    %358 = vmatpush1.msra.mxu0 0.0
    %359 = vmatprep.subr.mxu0 0.0
    %360 = vmatpush1.msra.mxu0 0.0
    %361 = vmatprep.subr.mxu0 0.0
    %362 = vmatpush1.msra.mxu0 0.0
    %363 = vmatprep.subr.mxu0 0.0
    %364 = vmatpush1.msra.mxu0 0.0
    %365 = vmatprep.subr.mxu0 0.0
    %366 = vmatpush1.msra.mxu0 0.0
    %367 = vmatprep.subr.mxu0 0.0
    %368 = vmatpush1.msra.mxu0 0.0
    %369 = vmatprep.subr.mxu0 0.0
    %370 = vmatpush1.msra.mxu0 0.0
    %371 = vmatprep.subr.mxu0 0.0
    %372 = vmatpush1.msra.mxu0 0.0
    %373 = vmatprep.subr.mxu0 0.0
    %374 = vmatpush1.msra.mxu0 0.0
    %375 = vmatprep.subr.mxu0 0.0
    %376 = vmatpush1.msra.mxu0 0.0
    %377 = vmatprep.subr.mxu0 0.0
    %378 = vmatpush1.msra.mxu0 0.0
    %379 = vmatprep.subr.mxu0 0.0
    %380 = vmatpush1.msra.mxu0 0.0
    %381 = vmatprep.subr.mxu0 0.0
    %382 = vmatpush1.msra.mxu0 0.0
    %383 = vmatprep.subr.mxu0 0.0
    %384 = vmatpush1.msra.mxu0 0.0
    %385 = vmatprep.subr.mxu0 0.0
    %386 = vmatpush1.msra.mxu0 0.0
    %387 = vmatprep.subr.mxu0 0.0
    %388 = vmatpush1.msra.mxu0 0.0
    %389 = vmatprep.subr.mxu0 0.0
    %390 = vmatpush1.msra.mxu0 0.0
    %391 = vmatprep.subr.mxu0 0.0
    %392 = vmatpush1.msra.mxu0 0.0
    %393 = vmatprep.subr.mxu0 0.0
    %394 = vmatpush1.msra.mxu0 0.0
    %395 = vmatprep.subr.mxu0 0.0
    %396 = vmatpush1.msra.mxu0 0.0
    %397 = vmatprep.mubr.f32.mxu0 0.0
    %398 = vmatmul.mubr.f32.gmra.mrb[0].mxu0 %v322
    %v399 = vpop.f32.mrb[0].mxu0
    %v400 = vadd.f32 %v320, %v399
    %v401 = vpop.f32.mrb[0].mxu0
    %402 = vmatprep.mubr.f32.mxu0 0.0
    %403 = vmatmul.mubr.f32.gmra.mrb[0].mxu0 %v325
    %v404 = vpop.f32.mrb[0].mxu0
    %v405 = vadd.f32 %v320, %v404
    %v406 = vpop.f32.mrb[0].mxu0
    %407 = vmatprep.mubr.f32.mxu0 0.0
    %408 = vmatmul.mubr.f32.gmra.mrb[0].mxu0 %v328
    %v409 = vpop.f32.mrb[0].mxu0
    %v410 = vadd.f32 %v320, %v409
    %v411 = vpop.f32.mrb[0].mxu0
    %412 = vmatprep.mubr.f32.mxu0 0.0
    %413 = vmatmul.mubr.f32.gmra.mrb[0].mxu0 %v331
    %v414 = vpop.f32.mrb[0].mxu0
    %v415 = vadd.f32 %v320, %v414
    %v416 = vpop.f32.mrb[0].mxu0
    %417 = vdwg.mxu0
    %v418 = vsub.f32 1.0, %v34
    %v419 = vsub.f32 1.0, %v35
    %v420 = vmul.f32 %v418, -3.4028235e+38
    %v421 = vmul.f32 %v419, -3.4028235e+38
    %v424 = vlaneseq
    %v425 = vshrl.u32 %v424, 7
    %v426 = vsub.s32 0, %v425
    %v427 = vrot.slane %v420, %v426
    %v428 = vlaneseq
    %v429 = vshrl.u32 %v428, 7
    %v430 = vsub.s32 0, %v429
    %v431 = vrot.slane %v421, %v430
    %436 = vrot.lane.b32.xlu0 %v400, 96
    %v437 = vpop.permute.xlu0 %436
    %438 = vrot.lane.b32.xlu0 %v405, 96
    %v439 = vpop.permute.xlu0 %438
    %vm440 = vcmask 64512
    %v441 = vsel %vm440, %v405, 0
    %v443 = vsel %vm440, %v437, 0
    %v445 = vsel %vm440, %v439, 0
    %447 = vmatprep.subr.mxu0 0.0
    %448 = vmatpush1.xpose.msra.mxu0 %v443
    %449 = vmatprep.subr.mxu0 0.0
    %450 = vmatpush1.xpose.msra.mxu0 %v445
    %451 = vmatprep.subr.mxu0 0.0
    %452 = vmatpush1.xpose.msra.mxu0 0.0
    %453 = vmatprep.subr.mxu0 0.0
    %454 = vmatpush1.xpose.msra.mxu0 0.0
    %455 = vmatprep.subr.mxu0 0.0
    %456 = vmatpush1.xpose.msra.mxu0 0.0
    %457 = vmatprep.subr.mxu0 0.0
    %458 = vmatpush1.xpose.msra.mxu0 0.0
    %459 = vmatprep.subr.mxu0 0.0
    %460 = vmatpush1.xpose.msra.mxu0 0.0
    %461 = vmatprep.subr.mxu0 0.0
    %462 = vmatpush1.xpose.msra.mxu0 0.0
    %463 = vmatprep.subr.mxu0 0.0
    %464 = vmatpush1.xpose.msra.mxu0 0.0
    %465 = vmatprep.subr.mxu0 0.0
    %466 = vmatpush1.xpose.msra.mxu0 0.0
    %467 = vmatprep.subr.mxu0 0.0
    %468 = vmatpush1.xpose.msra.mxu0 0.0
    %469 = vmatprep.subr.mxu0 0.0
    %470 = vmatpush1.xpose.msra.mxu0 0.0
    %471 = vmatprep.subr.mxu0 0.0
    %472 = vmatpush1.xpose.msra.mxu0 0.0
    %473 = vmatprep.subr.mxu0 0.0
    %474 = vmatpush1.xpose.msra.mxu0 0.0
    %475 = vmatprep.subr.mxu0 0.0
    %476 = vmatpush1.xpose.msra.mxu0 0.0
    %477 = vmatprep.subr.mxu0 0.0
    %478 = vmatpush1.xpose.msra.mxu0 0.0
    %479 = vmatprep.subr.mxu0 0.0
    %480 = vmatpush1.xpose.msra.mxu0 0.0
    %481 = vmatprep.subr.mxu0 0.0
    %482 = vmatpush1.xpose.msra.mxu0 0.0
    %483 = vmatprep.subr.mxu0 0.0
    %484 = vmatpush1.xpose.msra.mxu0 0.0
    %485 = vmatprep.subr.mxu0 0.0
    %486 = vmatpush1.xpose.msra.mxu0 0.0
    %487 = vmatprep.subr.mxu0 0.0
    %488 = vmatpush1.xpose.msra.mxu0 0.0
    %489 = vmatprep.subr.mxu0 0.0
    %490 = vmatpush1.xpose.msra.mxu0 0.0
    %491 = vmatprep.subr.mxu0 0.0
    %492 = vmatpush1.xpose.msra.mxu0 0.0
    %493 = vmatprep.subr.mxu0 0.0
    %494 = vmatpush1.xpose.msra.mxu0 0.0
    %495 = vmatprep.subr.mxu0 0.0
    %496 = vmatpush1.xpose.msra.mxu0 0.0
    %497 = vmatprep.subr.mxu0 0.0
    %498 = vmatpush1.xpose.msra.mxu0 0.0
    %499 = vmatprep.subr.mxu0 0.0
    %500 = vmatpush1.xpose.msra.mxu0 0.0
    %501 = vmatprep.subr.mxu0 0.0
    %502 = vmatpush1.xpose.msra.mxu0 0.0
    %503 = vmatprep.subr.mxu0 0.0
    %504 = vmatpush1.xpose.msra.mxu0 0.0
    %505 = vmatprep.subr.mxu0 0.0
    %506 = vmatpush1.xpose.msra.mxu0 0.0
    %507 = vmatprep.subr.mxu0 0.0
    %508 = vmatpush1.xpose.msra.mxu0 0.0
    %509 = vmatprep.subr.mxu0 0.0
    %510 = vmatpush1.xpose.msra.mxu0 0.0
    %511 = vmatprep.mubr.f32.mxu0 0.0
    %512 = vmatmul.mubr.f32.gmra.mrb[0].mxu0 %v441
    %v513 = vpop.f32.mrb[0].mxu0
    %v514 = vadd.f32 %v427, %v513
    %v515 = vpop.f32.mrb[0].mxu0
    %516 = vdwg.mxu0
    %519 = vrot.lane.b32.xlu0 %v410, 96
    %v520 = vpop.permute.xlu0 %519
    %521 = vrot.lane.b32.xlu0 %v415, 96
    %v522 = vpop.permute.xlu0 %521
    %v523 = vsel %vm440, %v415, 0
    %v525 = vsel %vm440, %v520, 0
    %v527 = vsel %vm440, %v522, 0
    %529 = vmatprep.subr.mxu0 0.0
    %530 = vmatpush1.xpose.msra.mxu0 %v525
    %531 = vmatprep.subr.mxu0 0.0
    %532 = vmatpush1.xpose.msra.mxu0 %v527
    %533 = vmatprep.subr.mxu0 0.0
    %534 = vmatpush1.xpose.msra.mxu0 0.0
    %535 = vmatprep.subr.mxu0 0.0
    %536 = vmatpush1.xpose.msra.mxu0 0.0
    %537 = vmatprep.subr.mxu0 0.0
    %538 = vmatpush1.xpose.msra.mxu0 0.0
    %539 = vmatprep.subr.mxu0 0.0
    %540 = vmatpush1.xpose.msra.mxu0 0.0
    %541 = vmatprep.subr.mxu0 0.0
    %542 = vmatpush1.xpose.msra.mxu0 0.0
    %543 = vmatprep.subr.mxu0 0.0
    %544 = vmatpush1.xpose.msra.mxu0 0.0
    %545 = vmatprep.subr.mxu0 0.0
    %546 = vmatpush1.xpose.msra.mxu0 0.0
    %547 = vmatprep.subr.mxu0 0.0
    %548 = vmatpush1.xpose.msra.mxu0 0.0
    %549 = vmatprep.subr.mxu0 0.0
    %550 = vmatpush1.xpose.msra.mxu0 0.0
    %551 = vmatprep.subr.mxu0 0.0
    %552 = vmatpush1.xpose.msra.mxu0 0.0
    %553 = vmatprep.subr.mxu0 0.0
    %554 = vmatpush1.xpose.msra.mxu0 0.0
    %555 = vmatprep.subr.mxu0 0.0
    %556 = vmatpush1.xpose.msra.mxu0 0.0
    %557 = vmatprep.subr.mxu0 0.0
    %558 = vmatpush1.xpose.msra.mxu0 0.0
    %559 = vmatprep.subr.mxu0 0.0
    %560 = vmatpush1.xpose.msra.mxu0 0.0
    %561 = vmatprep.subr.mxu0 0.0
    %562 = vmatpush1.xpose.msra.mxu0 0.0
    %563 = vmatprep.subr.mxu0 0.0
    %564 = vmatpush1.xpose.msra.mxu0 0.0
    %565 = vmatprep.subr.mxu0 0.0
    %566 = vmatpush1.xpose.msra.mxu0 0.0
    %567 = vmatprep.subr.mxu0 0.0
    %568 = vmatpush1.xpose.msra.mxu0 0.0
    %569 = vmatprep.subr.mxu0 0.0
    %570 = vmatpush1.xpose.msra.mxu0 0.0
    %571 = vmatprep.subr.mxu0 0.0
    %572 = vmatpush1.xpose.msra.mxu0 0.0
    %573 = vmatprep.subr.mxu0 0.0
    %574 = vmatpush1.xpose.msra.mxu0 0.0
    %575 = vmatprep.subr.mxu0 0.0
    %576 = vmatpush1.xpose.msra.mxu0 0.0
    %577 = vmatprep.subr.mxu0 0.0
    %578 = vmatpush1.xpose.msra.mxu0 0.0
    %579 = vmatprep.subr.mxu0 0.0
    %580 = vmatpush1.xpose.msra.mxu0 0.0
    %581 = vmatprep.subr.mxu0 0.0
    %582 = vmatpush1.xpose.msra.mxu0 0.0
    %583 = vmatprep.subr.mxu0 0.0
    %584 = vmatpush1.xpose.msra.mxu0 0.0
    %585 = vmatprep.subr.mxu0 0.0
    %586 = vmatpush1.xpose.msra.mxu0 0.0
    %587 = vmatprep.subr.mxu0 0.0
    %588 = vmatpush1.xpose.msra.mxu0 0.0
    %589 = vmatprep.subr.mxu0 0.0
    %590 = vmatpush1.xpose.msra.mxu0 0.0
    %591 = vmatprep.subr.mxu0 0.0
    %592 = vmatpush1.xpose.msra.mxu0 0.0
    %593 = vmatprep.mubr.f32.mxu0 0.0
    %594 = vmatmul.mubr.f32.gmra.mrb[0].mxu0 %v523
    %v595 = vpop.f32.mrb[0].mxu0
    %v596 = vadd.f32 %v431, %v595
    %v597 = vpop.f32.mrb[0].mxu0
    %598 = vdwg.mxu0
    %vm599 = vcmask 130048
    %v600 = vsel %vm599, %v514, -inf
    %601 = vmax.xlane.f32.xlu0 %v600
    %v602 = vpop.xlane.xlu0 %601
    %v603 = vsel %vm599, %v596, -inf
    %604 = vmax.xlane.f32.xlu0 %v603
    %v605 = vpop.xlane.xlu0 %604
    %v606 = vsub.f32 %v514, %v602
    %v607 = vsub.f32 %v596, %v605
    %v608 = vmul.f32 %v606, 1.442695
    %v609 = vpow.pop %v608
    %v610 = vmul.f32 %v607, 1.442695
    %v611 = vpow.pop %v610
    %v612 = vsel %vm599, %v609, 0.0
    %613 = vadd.xlane.f32.xlu0 %v612
    %v614 = vpop.xlane.xlu0 %613
    %v615 = vsel %vm599, %v611, 0.0
    %616 = vadd.xlane.f32.xlu0 %v615
    %v617 = vpop.xlane.xlu0 %616
    %v618 = vrcp.pop %v614
    %v619 = vrcp.pop %v617
    %v620 = vmul.f32 %v609, %v618
    %v621 = vmul.f32 %v611, %v619
    %v624 = vlaneseq
    %v625 = vshrl.u32 %v624, 7
    %v626 = vsub.s32 0, %v625
    %v627 = vrot.slane %v34, %v626
    %v628 = vlaneseq
    %v629 = vshrl.u32 %v628, 7
    %v630 = vsub.s32 0, %v629
    %v631 = vrot.slane %v35, %v630
    %v634 = vmul.f32 %v620, %v627
    %v635 = vmul.f32 %v621, %v631
    %636 = vrot.lane.b32.xlu0 %v400, 64
    %v637 = vpop.permute.xlu0 %636
    %638 = vrot.lane.b32.xlu0 %v405, 64
    %v639 = vpop.permute.xlu0 %638
    %v643 = vsel %vm599, %v634, 0
    %645 = vmatprep.subr.mxu0 0.0
    %646 = vmatpush1.msra.mxu0 %v637
    %647 = vmatprep.subr.mxu0 0.0
    %648 = vmatpush1.msra.mxu0 %v639
    %649 = vmatprep.subr.mxu0 0.0
    %650 = vmatpush1.msra.mxu0 0.0
    %651 = vmatprep.subr.mxu0 0.0
    %652 = vmatpush1.msra.mxu0 0.0
    %653 = vmatprep.subr.mxu0 0.0
    %654 = vmatpush1.msra.mxu0 0.0
    %655 = vmatprep.subr.mxu0 0.0
    %656 = vmatpush1.msra.mxu0 0.0
    %657 = vmatprep.subr.mxu0 0.0
    %658 = vmatpush1.msra.mxu0 0.0
    %659 = vmatprep.subr.mxu0 0.0
    %660 = vmatpush1.msra.mxu0 0.0
    %661 = vmatprep.subr.mxu0 0.0
    %662 = vmatpush1.msra.mxu0 0.0
    %663 = vmatprep.subr.mxu0 0.0
    %664 = vmatpush1.msra.mxu0 0.0
    %665 = vmatprep.subr.mxu0 0.0
    %666 = vmatpush1.msra.mxu0 0.0
    %667 = vmatprep.subr.mxu0 0.0
    %668 = vmatpush1.msra.mxu0 0.0
    %669 = vmatprep.subr.mxu0 0.0
    %670 = vmatpush1.msra.mxu0 0.0
    %671 = vmatprep.subr.mxu0 0.0
    %672 = vmatpush1.msra.mxu0 0.0
    %673 = vmatprep.subr.mxu0 0.0
    %674 = vmatpush1.msra.mxu0 0.0
    %675 = vmatprep.subr.mxu0 0.0
    %676 = vmatpush1.msra.mxu0 0.0
    %677 = vmatprep.subr.mxu0 0.0
    %678 = vmatpush1.msra.mxu0 0.0
    %679 = vmatprep.subr.mxu0 0.0
    %680 = vmatpush1.msra.mxu0 0.0
    %681 = vmatprep.subr.mxu0 0.0
    %682 = vmatpush1.msra.mxu0 0.0
    %683 = vmatprep.subr.mxu0 0.0
    %684 = vmatpush1.msra.mxu0 0.0
    %685 = vmatprep.subr.mxu0 0.0
    %686 = vmatpush1.msra.mxu0 0.0
    %687 = vmatprep.subr.mxu0 0.0
    %688 = vmatpush1.msra.mxu0 0.0
    %689 = vmatprep.subr.mxu0 0.0
    %690 = vmatpush1.msra.mxu0 0.0
    %691 = vmatprep.subr.mxu0 0.0
    %692 = vmatpush1.msra.mxu0 0.0
    %693 = vmatprep.subr.mxu0 0.0
    %694 = vmatpush1.msra.mxu0 0.0
    %695 = vmatprep.subr.mxu0 0.0
    %696 = vmatpush1.msra.mxu0 0.0
    %697 = vmatprep.subr.mxu0 0.0
    %698 = vmatpush1.msra.mxu0 0.0
    %699 = vmatprep.subr.mxu0 0.0
    %700 = vmatpush1.msra.mxu0 0.0
    %701 = vmatprep.subr.mxu0 0.0
    %702 = vmatpush1.msra.mxu0 0.0
    %703 = vmatprep.subr.mxu0 0.0
    %704 = vmatpush1.msra.mxu0 0.0
    %705 = vmatprep.subr.mxu0 0.0
    %706 = vmatpush1.msra.mxu0 0.0
    %707 = vmatprep.subr.mxu0 0.0
    %708 = vmatpush1.msra.mxu0 0.0
    %709 = vmatprep.mubr.f32.mxu0 0.0
    %710 = vmatmul.mubr.f32.gmra.mrb[0].mxu0 %v643
    %v711 = vpop.f32.mrb[0].mxu0
    %v712 = vadd.f32 0.0, %v711
    %v713 = vpop.f32.mrb[0].mxu0
    %714 = vdwg.mxu0
    %715 = vrot.lane.b32.xlu0 %v410, 64
    %v716 = vpop.permute.xlu0 %715
    %717 = vrot.lane.b32.xlu0 %v415, 64
    %v718 = vpop.permute.xlu0 %717
    %v722 = vsel %vm599, %v635, 0
    %724 = vmatprep.subr.mxu0 0.0
    %725 = vmatpush1.msra.mxu0 %v716
    %726 = vmatprep.subr.mxu0 0.0
    %727 = vmatpush1.msra.mxu0 %v718
    %728 = vmatprep.subr.mxu0 0.0
    %729 = vmatpush1.msra.mxu0 0.0
    %730 = vmatprep.subr.mxu0 0.0
    %731 = vmatpush1.msra.mxu0 0.0
    %732 = vmatprep.subr.mxu0 0.0
    %733 = vmatpush1.msra.mxu0 0.0
    %734 = vmatprep.subr.mxu0 0.0
    %735 = vmatpush1.msra.mxu0 0.0
    %736 = vmatprep.subr.mxu0 0.0
    %737 = vmatpush1.msra.mxu0 0.0
    %738 = vmatprep.subr.mxu0 0.0
    %739 = vmatpush1.msra.mxu0 0.0
    %740 = vmatprep.subr.mxu0 0.0
    %741 = vmatpush1.msra.mxu0 0.0
    %742 = vmatprep.subr.mxu0 0.0
    %743 = vmatpush1.msra.mxu0 0.0
    %744 = vmatprep.subr.mxu0 0.0
    %745 = vmatpush1.msra.mxu0 0.0
    %746 = vmatprep.subr.mxu0 0.0
    %747 = vmatpush1.msra.mxu0 0.0
    %748 = vmatprep.subr.mxu0 0.0
    %749 = vmatpush1.msra.mxu0 0.0
    %750 = vmatprep.subr.mxu0 0.0
    %751 = vmatpush1.msra.mxu0 0.0
    %752 = vmatprep.subr.mxu0 0.0
    %753 = vmatpush1.msra.mxu0 0.0
    %754 = vmatprep.subr.mxu0 0.0
    %755 = vmatpush1.msra.mxu0 0.0
    %756 = vmatprep.subr.mxu0 0.0
    %757 = vmatpush1.msra.mxu0 0.0
    %758 = vmatprep.subr.mxu0 0.0
    %759 = vmatpush1.msra.mxu0 0.0
    %760 = vmatprep.subr.mxu0 0.0
    %761 = vmatpush1.msra.mxu0 0.0
    %762 = vmatprep.subr.mxu0 0.0
    %763 = vmatpush1.msra.mxu0 0.0
    %764 = vmatprep.subr.mxu0 0.0
    %765 = vmatpush1.msra.mxu0 0.0
    %766 = vmatprep.subr.mxu0 0.0
    %767 = vmatpush1.msra.mxu0 0.0
    %768 = vmatprep.subr.mxu0 0.0
    %769 = vmatpush1.msra.mxu0 0.0
    %770 = vmatprep.subr.mxu0 0.0
    %771 = vmatpush1.msra.mxu0 0.0
    %772 = vmatprep.subr.mxu0 0.0
    %773 = vmatpush1.msra.mxu0 0.0
    %774 = vmatprep.subr.mxu0 0.0
    %775 = vmatpush1.msra.mxu0 0.0
    %776 = vmatprep.subr.mxu0 0.0
    %777 = vmatpush1.msra.mxu0 0.0
    %778 = vmatprep.subr.mxu0 0.0
    %779 = vmatpush1.msra.mxu0 0.0
    %780 = vmatprep.subr.mxu0 0.0
    %781 = vmatpush1.msra.mxu0 0.0
    %782 = vmatprep.subr.mxu0 0.0
    %783 = vmatpush1.msra.mxu0 0.0
    %784 = vmatprep.subr.mxu0 0.0
    %785 = vmatpush1.msra.mxu0 0.0
    %786 = vmatprep.subr.mxu0 0.0
    %787 = vmatpush1.msra.mxu0 0.0
    %788 = vmatprep.mubr.f32.mxu0 0.0
    %789 = vmatmul.mubr.f32.gmra.mrb[0].mxu0 %v722
    %v790 = vpop.f32.mrb[0].mxu0
    %v791 = vadd.f32 0.0, %v790
    %v792 = vpop.f32.mrb[0].mxu0
    %793 = vdwg.mxu0
    %794 = vrot.lane.b32.xlu0 %v405, 120
    %v795 = vpop.permute.xlu0 %794
    %796 = vrot.lane.b32.xlu0 %v400, 88
    %v797 = vpop.permute.xlu0 %796
    %798 = vrot.lane.b32.xlu0 %v405, 88
    %v799 = vpop.permute.xlu0 %798
    %v800 = vsel %vm440, %v795, 0
    %v802 = vsel %vm440, %v797, 0
    %v804 = vsel %vm440, %v799, 0
    %806 = vmatprep.subr.mxu0 0.0
    %807 = vmatpush1.xpose.msra.mxu0 %v802
    %808 = vmatprep.subr.mxu0 0.0
    %809 = vmatpush1.xpose.msra.mxu0 %v804
    %810 = vmatprep.subr.mxu0 0.0
    %811 = vmatpush1.xpose.msra.mxu0 0.0
    %812 = vmatprep.subr.mxu0 0.0
    %813 = vmatpush1.xpose.msra.mxu0 0.0
    %814 = vmatprep.subr.mxu0 0.0
    %815 = vmatpush1.xpose.msra.mxu0 0.0
    %816 = vmatprep.subr.mxu0 0.0
    %817 = vmatpush1.xpose.msra.mxu0 0.0
    %818 = vmatprep.subr.mxu0 0.0
    %819 = vmatpush1.xpose.msra.mxu0 0.0
    %820 = vmatprep.subr.mxu0 0.0
    %821 = vmatpush1.xpose.msra.mxu0 0.0
    %822 = vmatprep.subr.mxu0 0.0
    %823 = vmatpush1.xpose.msra.mxu0 0.0
    %824 = vmatprep.subr.mxu0 0.0
    %825 = vmatpush1.xpose.msra.mxu0 0.0
    %826 = vmatprep.subr.mxu0 0.0
    %827 = vmatpush1.xpose.msra.mxu0 0.0
    %828 = vmatprep.subr.mxu0 0.0
    %829 = vmatpush1.xpose.msra.mxu0 0.0
    %830 = vmatprep.subr.mxu0 0.0
    %831 = vmatpush1.xpose.msra.mxu0 0.0
    %832 = vmatprep.subr.mxu0 0.0
    %833 = vmatpush1.xpose.msra.mxu0 0.0
    %834 = vmatprep.subr.mxu0 0.0
    %835 = vmatpush1.xpose.msra.mxu0 0.0
    %836 = vmatprep.subr.mxu0 0.0
    %837 = vmatpush1.xpose.msra.mxu0 0.0
    %838 = vmatprep.subr.mxu0 0.0
    %839 = vmatpush1.xpose.msra.mxu0 0.0
    %840 = vmatprep.subr.mxu0 0.0
    %841 = vmatpush1.xpose.msra.mxu0 0.0
    %842 = vmatprep.subr.mxu0 0.0
    %843 = vmatpush1.xpose.msra.mxu0 0.0
    %844 = vmatprep.subr.mxu0 0.0
    %845 = vmatpush1.xpose.msra.mxu0 0.0
    %846 = vmatprep.subr.mxu0 0.0
    %847 = vmatpush1.xpose.msra.mxu0 0.0
    %848 = vmatprep.subr.mxu0 0.0
    %849 = vmatpush1.xpose.msra.mxu0 0.0
    %850 = vmatprep.subr.mxu0 0.0
    %851 = vmatpush1.xpose.msra.mxu0 0.0
    %852 = vmatprep.subr.mxu0 0.0
    %853 = vmatpush1.xpose.msra.mxu0 0.0
    %854 = vmatprep.subr.mxu0 0.0
    %855 = vmatpush1.xpose.msra.mxu0 0.0
    %856 = vmatprep.subr.mxu0 0.0
    %857 = vmatpush1.xpose.msra.mxu0 0.0
    %858 = vmatprep.subr.mxu0 0.0
    %859 = vmatpush1.xpose.msra.mxu0 0.0
    %860 = vmatprep.subr.mxu0 0.0
    %861 = vmatpush1.xpose.msra.mxu0 0.0
    %862 = vmatprep.subr.mxu0 0.0
    %863 = vmatpush1.xpose.msra.mxu0 0.0
    %864 = vmatprep.subr.mxu0 0.0
    %865 = vmatpush1.xpose.msra.mxu0 0.0
    %866 = vmatprep.subr.mxu0 0.0
    %867 = vmatpush1.xpose.msra.mxu0 0.0
    %868 = vmatprep.subr.mxu0 0.0
    %869 = vmatpush1.xpose.msra.mxu0 0.0
    %870 = vmatprep.mubr.f32.mxu0 0.0
    %871 = vmatmul.mubr.f32.gmra.mrb[0].mxu0 %v800
    %v872 = vpop.f32.mrb[0].mxu0
    %v873 = vadd.f32 %v427, %v872
    %v874 = vpop.f32.mrb[0].mxu0
    %875 = vdwg.mxu0
    %876 = vrot.lane.b32.xlu0 %v415, 120
    %v877 = vpop.permute.xlu0 %876
    %878 = vrot.lane.b32.xlu0 %v410, 88
    %v879 = vpop.permute.xlu0 %878
    %880 = vrot.lane.b32.xlu0 %v415, 88
    %v881 = vpop.permute.xlu0 %880
    %v882 = vsel %vm440, %v877, 0
    %v884 = vsel %vm440, %v879, 0
    %v886 = vsel %vm440, %v881, 0
    %888 = vmatprep.subr.mxu0 0.0
    %889 = vmatpush1.xpose.msra.mxu0 %v884
    %890 = vmatprep.subr.mxu0 0.0
    %891 = vmatpush1.xpose.msra.mxu0 %v886
    %892 = vmatprep.subr.mxu0 0.0
    %893 = vmatpush1.xpose.msra.mxu0 0.0
    %894 = vmatprep.subr.mxu0 0.0
    %895 = vmatpush1.xpose.msra.mxu0 0.0
    %896 = vmatprep.subr.mxu0 0.0
    %897 = vmatpush1.xpose.msra.mxu0 0.0
    %898 = vmatprep.subr.mxu0 0.0
    %899 = vmatpush1.xpose.msra.mxu0 0.0
    %900 = vmatprep.subr.mxu0 0.0
    %901 = vmatpush1.xpose.msra.mxu0 0.0
    %902 = vmatprep.subr.mxu0 0.0
    %903 = vmatpush1.xpose.msra.mxu0 0.0
    %904 = vmatprep.subr.mxu0 0.0
    %905 = vmatpush1.xpose.msra.mxu0 0.0
    %906 = vmatprep.subr.mxu0 0.0
    %907 = vmatpush1.xpose.msra.mxu0 0.0
    %908 = vmatprep.subr.mxu0 0.0
    %909 = vmatpush1.xpose.msra.mxu0 0.0
    %910 = vmatprep.subr.mxu0 0.0
    %911 = vmatpush1.xpose.msra.mxu0 0.0
    %912 = vmatprep.subr.mxu0 0.0
    %913 = vmatpush1.xpose.msra.mxu0 0.0
    %914 = vmatprep.subr.mxu0 0.0
    %915 = vmatpush1.xpose.msra.mxu0 0.0
    %916 = vmatprep.subr.mxu0 0.0
    %917 = vmatpush1.xpose.msra.mxu0 0.0
    %918 = vmatprep.subr.mxu0 0.0
    %919 = vmatpush1.xpose.msra.mxu0 0.0
    %920 = vmatprep.subr.mxu0 0.0
    %921 = vmatpush1.xpose.msra.mxu0 0.0
    %922 = vmatprep.subr.mxu0 0.0
    %923 = vmatpush1.xpose.msra.mxu0 0.0
    %924 = vmatprep.subr.mxu0 0.0
    %925 = vmatpush1.xpose.msra.mxu0 0.0
    %926 = vmatprep.subr.mxu0 0.0
    %927 = vmatpush1.xpose.msra.mxu0 0.0
    %928 = vmatprep.subr.mxu0 0.0
    %929 = vmatpush1.xpose.msra.mxu0 0.0
    %930 = vmatprep.subr.mxu0 0.0
    %931 = vmatpush1.xpose.msra.mxu0 0.0
    %932 = vmatprep.subr.mxu0 0.0
    %933 = vmatpush1.xpose.msra.mxu0 0.0
    %934 = vmatprep.subr.mxu0 0.0
    %935 = vmatpush1.xpose.msra.mxu0 0.0
    %936 = vmatprep.subr.mxu0 0.0
    %937 = vmatpush1.xpose.msra.mxu0 0.0
    %938 = vmatprep.subr.mxu0 0.0
    %939 = vmatpush1.xpose.msra.mxu0 0.0
    %940 = vmatprep.subr.mxu0 0.0
    %941 = vmatpush1.xpose.msra.mxu0 0.0
    %942 = vmatprep.subr.mxu0 0.0
    %943 = vmatpush1.xpose.msra.mxu0 0.0
    %944 = vmatprep.subr.mxu0 0.0
    %945 = vmatpush1.xpose.msra.mxu0 0.0
    %946 = vmatprep.subr.mxu0 0.0
    %947 = vmatpush1.xpose.msra.mxu0 0.0
    %948 = vmatprep.subr.mxu0 0.0
    %949 = vmatpush1.xpose.msra.mxu0 0.0
    %950 = vmatprep.subr.mxu0 0.0
    %951 = vmatpush1.xpose.msra.mxu0 0.0
    %952 = vmatprep.mubr.f32.mxu0 0.0
    %953 = vmatmul.mubr.f32.gmra.mrb[0].mxu0 %v882
    %v954 = vpop.f32.mrb[0].mxu0
    %v955 = vadd.f32 %v431, %v954
    %v956 = vpop.f32.mrb[0].mxu0
    %957 = vdwg.mxu0
    %v958 = vsel %vm599, %v873, -inf
    %959 = vmax.xlane.f32.xlu0 %v958
    %v960 = vpop.xlane.xlu0 %959
    %v961 = vsel %vm599, %v955, -inf
    %962 = vmax.xlane.f32.xlu0 %v961
    %v963 = vpop.xlane.xlu0 %962
    %v964 = vsub.f32 %v873, %v960
    %v965 = vsub.f32 %v955, %v963
    %v966 = vmul.f32 %v964, 1.442695
    %v967 = vpow.pop %v966
    %v968 = vmul.f32 %v965, 1.442695
    %v969 = vpow.pop %v968
    %v970 = vsel %vm599, %v967, 0.0
    %971 = vadd.xlane.f32.xlu0 %v970
    %v972 = vpop.xlane.xlu0 %971
    %v973 = vsel %vm599, %v969, 0.0
    %974 = vadd.xlane.f32.xlu0 %v973
    %v975 = vpop.xlane.xlu0 %974
    %v976 = vrcp.pop %v972
    %v977 = vrcp.pop %v975
    %v978 = vmul.f32 %v967, %v976
    %v979 = vmul.f32 %v969, %v977
    %v980 = vmul.f32 %v978, %v627
    %v981 = vmul.f32 %v979, %v631
    %982 = vrot.lane.b32.xlu0 %v400, 56
    %v983 = vpop.permute.xlu0 %982
    %984 = vrot.lane.b32.xlu0 %v405, 56
    %v985 = vpop.permute.xlu0 %984
    %v989 = vsel %vm599, %v980, 0
    %991 = vmatprep.subr.mxu0 0.0
    %992 = vmatpush1.msra.mxu0 %v983
    %993 = vmatprep.subr.mxu0 0.0
    %994 = vmatpush1.msra.mxu0 %v985
    %995 = vmatprep.subr.mxu0 0.0
    %996 = vmatpush1.msra.mxu0 0.0
    %997 = vmatprep.subr.mxu0 0.0
    %998 = vmatpush1.msra.mxu0 0.0
    %999 = vmatprep.subr.mxu0 0.0
    %1000 = vmatpush1.msra.mxu0 0.0
    %1001 = vmatprep.subr.mxu0 0.0
    %1002 = vmatpush1.msra.mxu0 0.0
    %1003 = vmatprep.subr.mxu0 0.0
    %1004 = vmatpush1.msra.mxu0 0.0
    %1005 = vmatprep.subr.mxu0 0.0
    %1006 = vmatpush1.msra.mxu0 0.0
    %1007 = vmatprep.subr.mxu0 0.0
    %1008 = vmatpush1.msra.mxu0 0.0
    %1009 = vmatprep.subr.mxu0 0.0
    %1010 = vmatpush1.msra.mxu0 0.0
    %1011 = vmatprep.subr.mxu0 0.0
    %1012 = vmatpush1.msra.mxu0 0.0
    %1013 = vmatprep.subr.mxu0 0.0
    %1014 = vmatpush1.msra.mxu0 0.0
    %1015 = vmatprep.subr.mxu0 0.0
    %1016 = vmatpush1.msra.mxu0 0.0
    %1017 = vmatprep.subr.mxu0 0.0
    %1018 = vmatpush1.msra.mxu0 0.0
    %1019 = vmatprep.subr.mxu0 0.0
    %1020 = vmatpush1.msra.mxu0 0.0
    %1021 = vmatprep.subr.mxu0 0.0
    %1022 = vmatpush1.msra.mxu0 0.0
    %1023 = vmatprep.subr.mxu0 0.0
    %1024 = vmatpush1.msra.mxu0 0.0
    %1025 = vmatprep.subr.mxu0 0.0
    %1026 = vmatpush1.msra.mxu0 0.0
    %1027 = vmatprep.subr.mxu0 0.0
    %1028 = vmatpush1.msra.mxu0 0.0
    %1029 = vmatprep.subr.mxu0 0.0
    %1030 = vmatpush1.msra.mxu0 0.0
    %1031 = vmatprep.subr.mxu0 0.0
    %1032 = vmatpush1.msra.mxu0 0.0
    %1033 = vmatprep.subr.mxu0 0.0
    %1034 = vmatpush1.msra.mxu0 0.0
    %1035 = vmatprep.subr.mxu0 0.0
    %1036 = vmatpush1.msra.mxu0 0.0
    %1037 = vmatprep.subr.mxu0 0.0
    %1038 = vmatpush1.msra.mxu0 0.0
    %1039 = vmatprep.subr.mxu0 0.0
    %1040 = vmatpush1.msra.mxu0 0.0
    %1041 = vmatprep.subr.mxu0 0.0
    %1042 = vmatpush1.msra.mxu0 0.0
    %1043 = vmatprep.subr.mxu0 0.0
    %1044 = vmatpush1.msra.mxu0 0.0
    %1045 = vmatprep.subr.mxu0 0.0
    %1046 = vmatpush1.msra.mxu0 0.0
    %1047 = vmatprep.subr.mxu0 0.0
    %1048 = vmatpush1.msra.mxu0 0.0
    %1049 = vmatprep.subr.mxu0 0.0
    %1050 = vmatpush1.msra.mxu0 0.0
    %1051 = vmatprep.subr.mxu0 0.0
    %1052 = vmatpush1.msra.mxu0 0.0
    %1053 = vmatprep.subr.mxu0 0.0
    %1054 = vmatpush1.msra.mxu0 0.0
    %1055 = vmatprep.mubr.f32.mxu0 0.0
    %1056 = vmatmul.mubr.f32.gmra.mrb[0].mxu0 %v989
    %v1057 = vpop.f32.mrb[0].mxu0
    %v1058 = vadd.f32 0.0, %v1057
    %v1059 = vpop.f32.mrb[0].mxu0
    %1060 = vdwg.mxu0
    %1061 = vrot.lane.b32.xlu0 %v410, 56
    %v1062 = vpop.permute.xlu0 %1061
    %1063 = vrot.lane.b32.xlu0 %v415, 56
    %v1064 = vpop.permute.xlu0 %1063
    %v1068 = vsel %vm599, %v981, 0
    %1070 = vmatprep.subr.mxu0 0.0
    %1071 = vmatpush1.msra.mxu0 %v1062
    %1072 = vmatprep.subr.mxu0 0.0
    %1073 = vmatpush1.msra.mxu0 %v1064
    %1074 = vmatprep.subr.mxu0 0.0
    %1075 = vmatpush1.msra.mxu0 0.0
    %1076 = vmatprep.subr.mxu0 0.0
    %1077 = vmatpush1.msra.mxu0 0.0
    %1078 = vmatprep.subr.mxu0 0.0
    %1079 = vmatpush1.msra.mxu0 0.0
    %1080 = vmatprep.subr.mxu0 0.0
    %1081 = vmatpush1.msra.mxu0 0.0
    %1082 = vmatprep.subr.mxu0 0.0
    %1083 = vmatpush1.msra.mxu0 0.0
    %1084 = vmatprep.subr.mxu0 0.0
    %1085 = vmatpush1.msra.mxu0 0.0
    %1086 = vmatprep.subr.mxu0 0.0
    %1087 = vmatpush1.msra.mxu0 0.0
    %1088 = vmatprep.subr.mxu0 0.0
    %1089 = vmatpush1.msra.mxu0 0.0
    %1090 = vmatprep.subr.mxu0 0.0
    %1091 = vmatpush1.msra.mxu0 0.0
    %1092 = vmatprep.subr.mxu0 0.0
    %1093 = vmatpush1.msra.mxu0 0.0
    %1094 = vmatprep.subr.mxu0 0.0
    %1095 = vmatpush1.msra.mxu0 0.0
    %1096 = vmatprep.subr.mxu0 0.0
    %1097 = vmatpush1.msra.mxu0 0.0
    %1098 = vmatprep.subr.mxu0 0.0
    %1099 = vmatpush1.msra.mxu0 0.0
    %1100 = vmatprep.subr.mxu0 0.0
    %1101 = vmatpush1.msra.mxu0 0.0
    %1102 = vmatprep.subr.mxu0 0.0
    %1103 = vmatpush1.msra.mxu0 0.0
    %1104 = vmatprep.subr.mxu0 0.0
    %1105 = vmatpush1.msra.mxu0 0.0
    %1106 = vmatprep.subr.mxu0 0.0
    %1107 = vmatpush1.msra.mxu0 0.0
    %1108 = vmatprep.subr.mxu0 0.0
    %1109 = vmatpush1.msra.mxu0 0.0
    %1110 = vmatprep.subr.mxu0 0.0
    %1111 = vmatpush1.msra.mxu0 0.0
    %1112 = vmatprep.subr.mxu0 0.0
    %1113 = vmatpush1.msra.mxu0 0.0
    %1114 = vmatprep.subr.mxu0 0.0
    %1115 = vmatpush1.msra.mxu0 0.0
    %1116 = vmatprep.subr.mxu0 0.0
    %1117 = vmatpush1.msra.mxu0 0.0
    %1118 = vmatprep.subr.mxu0 0.0
    %1119 = vmatpush1.msra.mxu0 0.0
    %1120 = vmatprep.subr.mxu0 0.0
    %1121 = vmatpush1.msra.mxu0 0.0
    %1122 = vmatprep.subr.mxu0 0.0
    %1123 = vmatpush1.msra.mxu0 0.0
    %1124 = vmatprep.subr.mxu0 0.0
    %1125 = vmatpush1.msra.mxu0 0.0
    %1126 = vmatprep.subr.mxu0 0.0
    %1127 = vmatpush1.msra.mxu0 0.0
    %1128 = vmatprep.subr.mxu0 0.0
    %1129 = vmatpush1.msra.mxu0 0.0
    %1130 = vmatprep.subr.mxu0 0.0
    %1131 = vmatpush1.msra.mxu0 0.0
    %1132 = vmatprep.subr.mxu0 0.0
    %1133 = vmatpush1.msra.mxu0 0.0
    %1134 = vmatprep.mubr.f32.mxu0 0.0
    %1135 = vmatmul.mubr.f32.gmra.mrb[0].mxu0 %v1068
    %v1136 = vpop.f32.mrb[0].mxu0
    %v1137 = vadd.f32 0.0, %v1136
    %v1138 = vpop.f32.mrb[0].mxu0
    %1139 = vdwg.mxu0
    %1140 = vrot.lane.b32.xlu0 %v405, 112
    %v1141 = vpop.permute.xlu0 %1140
    %1142 = vrot.lane.b32.xlu0 %v400, 80
    %v1143 = vpop.permute.xlu0 %1142
    %1144 = vrot.lane.b32.xlu0 %v405, 80
    %v1145 = vpop.permute.xlu0 %1144
    %v1146 = vsel %vm440, %v1141, 0
    %v1148 = vsel %vm440, %v1143, 0
    %v1150 = vsel %vm440, %v1145, 0
    %1152 = vmatprep.subr.mxu0 0.0
    %1153 = vmatpush1.xpose.msra.mxu0 %v1148
    %1154 = vmatprep.subr.mxu0 0.0
    %1155 = vmatpush1.xpose.msra.mxu0 %v1150
    %1156 = vmatprep.subr.mxu0 0.0
    %1157 = vmatpush1.xpose.msra.mxu0 0.0
    %1158 = vmatprep.subr.mxu0 0.0
    %1159 = vmatpush1.xpose.msra.mxu0 0.0
    %1160 = vmatprep.subr.mxu0 0.0
    %1161 = vmatpush1.xpose.msra.mxu0 0.0
    %1162 = vmatprep.subr.mxu0 0.0
    %1163 = vmatpush1.xpose.msra.mxu0 0.0
    %1164 = vmatprep.subr.mxu0 0.0
    %1165 = vmatpush1.xpose.msra.mxu0 0.0
    %1166 = vmatprep.subr.mxu0 0.0
    %1167 = vmatpush1.xpose.msra.mxu0 0.0
    %1168 = vmatprep.subr.mxu0 0.0
    %1169 = vmatpush1.xpose.msra.mxu0 0.0
    %1170 = vmatprep.subr.mxu0 0.0
    %1171 = vmatpush1.xpose.msra.mxu0 0.0
    %1172 = vmatprep.subr.mxu0 0.0
    %1173 = vmatpush1.xpose.msra.mxu0 0.0
    %1174 = vmatprep.subr.mxu0 0.0
    %1175 = vmatpush1.xpose.msra.mxu0 0.0
    %1176 = vmatprep.subr.mxu0 0.0
    %1177 = vmatpush1.xpose.msra.mxu0 0.0
    %1178 = vmatprep.subr.mxu0 0.0
    %1179 = vmatpush1.xpose.msra.mxu0 0.0
    %1180 = vmatprep.subr.mxu0 0.0
    %1181 = vmatpush1.xpose.msra.mxu0 0.0
    %1182 = vmatprep.subr.mxu0 0.0
    %1183 = vmatpush1.xpose.msra.mxu0 0.0
    %1184 = vmatprep.subr.mxu0 0.0
    %1185 = vmatpush1.xpose.msra.mxu0 0.0
    %1186 = vmatprep.subr.mxu0 0.0
    %1187 = vmatpush1.xpose.msra.mxu0 0.0
    %1188 = vmatprep.subr.mxu0 0.0
    %1189 = vmatpush1.xpose.msra.mxu0 0.0
    %1190 = vmatprep.subr.mxu0 0.0
    %1191 = vmatpush1.xpose.msra.mxu0 0.0
    %1192 = vmatprep.subr.mxu0 0.0
    %1193 = vmatpush1.xpose.msra.mxu0 0.0
    %1194 = vmatprep.subr.mxu0 0.0
    %1195 = vmatpush1.xpose.msra.mxu0 0.0
    %1196 = vmatprep.subr.mxu0 0.0
    %1197 = vmatpush1.xpose.msra.mxu0 0.0
    %1198 = vmatprep.subr.mxu0 0.0
    %1199 = vmatpush1.xpose.msra.mxu0 0.0
    %1200 = vmatprep.subr.mxu0 0.0
    %1201 = vmatpush1.xpose.msra.mxu0 0.0
    %1202 = vmatprep.subr.mxu0 0.0
    %1203 = vmatpush1.xpose.msra.mxu0 0.0
    %1204 = vmatprep.subr.mxu0 0.0
    %1205 = vmatpush1.xpose.msra.mxu0 0.0
    %1206 = vmatprep.subr.mxu0 0.0
    %1207 = vmatpush1.xpose.msra.mxu0 0.0
    %1208 = vmatprep.subr.mxu0 0.0
    %1209 = vmatpush1.xpose.msra.mxu0 0.0
    %1210 = vmatprep.subr.mxu0 0.0
    %1211 = vmatpush1.xpose.msra.mxu0 0.0
    %1212 = vmatprep.subr.mxu0 0.0
    %1213 = vmatpush1.xpose.msra.mxu0 0.0
    %1214 = vmatprep.subr.mxu0 0.0
    %1215 = vmatpush1.xpose.msra.mxu0 0.0
    %1216 = vmatprep.mubr.f32.mxu0 0.0
    %1217 = vmatmul.mubr.f32.gmra.mrb[0].mxu0 %v1146
    %v1218 = vpop.f32.mrb[0].mxu0
    %v1219 = vadd.f32 %v427, %v1218
    %v1220 = vpop.f32.mrb[0].mxu0
    %1221 = vdwg.mxu0
    %1222 = vrot.lane.b32.xlu0 %v415, 112
    %v1223 = vpop.permute.xlu0 %1222
    %1224 = vrot.lane.b32.xlu0 %v410, 80
    %v1225 = vpop.permute.xlu0 %1224
    %1226 = vrot.lane.b32.xlu0 %v415, 80
    %v1227 = vpop.permute.xlu0 %1226
    %v1228 = vsel %vm440, %v1223, 0
    %v1230 = vsel %vm440, %v1225, 0
    %v1232 = vsel %vm440, %v1227, 0
    %1234 = vmatprep.subr.mxu0 0.0
    %1235 = vmatpush1.xpose.msra.mxu0 %v1230
    %1236 = vmatprep.subr.mxu0 0.0
    %1237 = vmatpush1.xpose.msra.mxu0 %v1232
    %1238 = vmatprep.subr.mxu0 0.0
    %1239 = vmatpush1.xpose.msra.mxu0 0.0
    %1240 = vmatprep.subr.mxu0 0.0
    %1241 = vmatpush1.xpose.msra.mxu0 0.0
    %1242 = vmatprep.subr.mxu0 0.0
    %1243 = vmatpush1.xpose.msra.mxu0 0.0
    %1244 = vmatprep.subr.mxu0 0.0
    %1245 = vmatpush1.xpose.msra.mxu0 0.0
    %1246 = vmatprep.subr.mxu0 0.0
    %1247 = vmatpush1.xpose.msra.mxu0 0.0
    %1248 = vmatprep.subr.mxu0 0.0
    %1249 = vmatpush1.xpose.msra.mxu0 0.0
    %1250 = vmatprep.subr.mxu0 0.0
    %1251 = vmatpush1.xpose.msra.mxu0 0.0
    %1252 = vmatprep.subr.mxu0 0.0
    %1253 = vmatpush1.xpose.msra.mxu0 0.0
    %1254 = vmatprep.subr.mxu0 0.0
    %1255 = vmatpush1.xpose.msra.mxu0 0.0
    %1256 = vmatprep.subr.mxu0 0.0
    %1257 = vmatpush1.xpose.msra.mxu0 0.0
    %1258 = vmatprep.subr.mxu0 0.0
    %1259 = vmatpush1.xpose.msra.mxu0 0.0
    %1260 = vmatprep.subr.mxu0 0.0
    %1261 = vmatpush1.xpose.msra.mxu0 0.0
    %1262 = vmatprep.subr.mxu0 0.0
    %1263 = vmatpush1.xpose.msra.mxu0 0.0
    %1264 = vmatprep.subr.mxu0 0.0
    %1265 = vmatpush1.xpose.msra.mxu0 0.0
    %1266 = vmatprep.subr.mxu0 0.0
    %1267 = vmatpush1.xpose.msra.mxu0 0.0
    %1268 = vmatprep.subr.mxu0 0.0
    %1269 = vmatpush1.xpose.msra.mxu0 0.0
    %1270 = vmatprep.subr.mxu0 0.0
    %1271 = vmatpush1.xpose.msra.mxu0 0.0
    %1272 = vmatprep.subr.mxu0 0.0
    %1273 = vmatpush1.xpose.msra.mxu0 0.0
    %1274 = vmatprep.subr.mxu0 0.0
    %1275 = vmatpush1.xpose.msra.mxu0 0.0
    %1276 = vmatprep.subr.mxu0 0.0
    %1277 = vmatpush1.xpose.msra.mxu0 0.0
    %1278 = vmatprep.subr.mxu0 0.0
    %1279 = vmatpush1.xpose.msra.mxu0 0.0
    %1280 = vmatprep.subr.mxu0 0.0
    %1281 = vmatpush1.xpose.msra.mxu0 0.0
    %1282 = vmatprep.subr.mxu0 0.0
    %1283 = vmatpush1.xpose.msra.mxu0 0.0
    %1284 = vmatprep.subr.mxu0 0.0
    %1285 = vmatpush1.xpose.msra.mxu0 0.0
    %1286 = vmatprep.subr.mxu0 0.0
    %1287 = vmatpush1.xpose.msra.mxu0 0.0
    %1288 = vmatprep.subr.mxu0 0.0
    %1289 = vmatpush1.xpose.msra.mxu0 0.0
    %1290 = vmatprep.subr.mxu0 0.0
    %1291 = vmatpush1.xpose.msra.mxu0 0.0
    %1292 = vmatprep.subr.mxu0 0.0
    %1293 = vmatpush1.xpose.msra.mxu0 0.0
    %1294 = vmatprep.subr.mxu0 0.0
    %1295 = vmatpush1.xpose.msra.mxu0 0.0
    %1296 = vmatprep.subr.mxu0 0.0
    %1297 = vmatpush1.xpose.msra.mxu0 0.0
    %1298 = vmatprep.mubr.f32.mxu0 0.0
    %1299 = vmatmul.mubr.f32.gmra.mrb[0].mxu0 %v1228
    %v1300 = vpop.f32.mrb[0].mxu0
    %v1301 = vadd.f32 %v431, %v1300
    %v1302 = vpop.f32.mrb[0].mxu0
    %1303 = vdwg.mxu0
    %v1304 = vsel %vm599, %v1219, -inf
    %1305 = vmax.xlane.f32.xlu0 %v1304
    %v1306 = vpop.xlane.xlu0 %1305
    %v1307 = vsel %vm599, %v1301, -inf
    %1308 = vmax.xlane.f32.xlu0 %v1307
    %v1309 = vpop.xlane.xlu0 %1308
    %v1310 = vsub.f32 %v1219, %v1306
    %v1311 = vsub.f32 %v1301, %v1309
    %v1312 = vmul.f32 %v1310, 1.442695
    %v1313 = vpow.pop %v1312
    %v1314 = vmul.f32 %v1311, 1.442695
    %v1315 = vpow.pop %v1314
    %v1316 = vsel %vm599, %v1313, 0.0
    %1317 = vadd.xlane.f32.xlu0 %v1316
    %v1318 = vpop.xlane.xlu0 %1317
    %v1319 = vsel %vm599, %v1315, 0.0
    %1320 = vadd.xlane.f32.xlu0 %v1319
    %v1321 = vpop.xlane.xlu0 %1320
    %v1322 = vrcp.pop %v1318
    %v1323 = vrcp.pop %v1321
    %v1324 = vmul.f32 %v1313, %v1322
    %v1325 = vmul.f32 %v1315, %v1323
    %v1326 = vmul.f32 %v1324, %v627
    %v1327 = vmul.f32 %v1325, %v631
    %1328 = vrot.lane.b32.xlu0 %v400, 48
    %v1329 = vpop.permute.xlu0 %1328
    %1330 = vrot.lane.b32.xlu0 %v405, 48
    %v1331 = vpop.permute.xlu0 %1330
    %v1335 = vsel %vm599, %v1326, 0
    %1337 = vmatprep.subr.mxu0 0.0
    %1338 = vmatpush1.msra.mxu0 %v1329
    %1339 = vmatprep.subr.mxu0 0.0
    %1340 = vmatpush1.msra.mxu0 %v1331
    %1341 = vmatprep.subr.mxu0 0.0
    %1342 = vmatpush1.msra.mxu0 0.0
    %1343 = vmatprep.subr.mxu0 0.0
    %1344 = vmatpush1.msra.mxu0 0.0
    %1345 = vmatprep.subr.mxu0 0.0
    %1346 = vmatpush1.msra.mxu0 0.0
    %1347 = vmatprep.subr.mxu0 0.0
    %1348 = vmatpush1.msra.mxu0 0.0
    %1349 = vmatprep.subr.mxu0 0.0
    %1350 = vmatpush1.msra.mxu0 0.0
    %1351 = vmatprep.subr.mxu0 0.0
    %1352 = vmatpush1.msra.mxu0 0.0
    %1353 = vmatprep.subr.mxu0 0.0
    %1354 = vmatpush1.msra.mxu0 0.0
    %1355 = vmatprep.subr.mxu0 0.0
    %1356 = vmatpush1.msra.mxu0 0.0
    %1357 = vmatprep.subr.mxu0 0.0
    %1358 = vmatpush1.msra.mxu0 0.0
    %1359 = vmatprep.subr.mxu0 0.0
    %1360 = vmatpush1.msra.mxu0 0.0
    %1361 = vmatprep.subr.mxu0 0.0
    %1362 = vmatpush1.msra.mxu0 0.0
    %1363 = vmatprep.subr.mxu0 0.0
    %1364 = vmatpush1.msra.mxu0 0.0
    %1365 = vmatprep.subr.mxu0 0.0
    %1366 = vmatpush1.msra.mxu0 0.0
    %1367 = vmatprep.subr.mxu0 0.0
    %1368 = vmatpush1.msra.mxu0 0.0
    %1369 = vmatprep.subr.mxu0 0.0
    %1370 = vmatpush1.msra.mxu0 0.0
    %1371 = vmatprep.subr.mxu0 0.0
    %1372 = vmatpush1.msra.mxu0 0.0
    %1373 = vmatprep.subr.mxu0 0.0
    %1374 = vmatpush1.msra.mxu0 0.0
    %1375 = vmatprep.subr.mxu0 0.0
    %1376 = vmatpush1.msra.mxu0 0.0
    %1377 = vmatprep.subr.mxu0 0.0
    %1378 = vmatpush1.msra.mxu0 0.0
    %1379 = vmatprep.subr.mxu0 0.0
    %1380 = vmatpush1.msra.mxu0 0.0
    %1381 = vmatprep.subr.mxu0 0.0
    %1382 = vmatpush1.msra.mxu0 0.0
    %1383 = vmatprep.subr.mxu0 0.0
    %1384 = vmatpush1.msra.mxu0 0.0
    %1385 = vmatprep.subr.mxu0 0.0
    %1386 = vmatpush1.msra.mxu0 0.0
    %1387 = vmatprep.subr.mxu0 0.0
    %1388 = vmatpush1.msra.mxu0 0.0
    %1389 = vmatprep.subr.mxu0 0.0
    %1390 = vmatpush1.msra.mxu0 0.0
    %1391 = vmatprep.subr.mxu0 0.0
    %1392 = vmatpush1.msra.mxu0 0.0
    %1393 = vmatprep.subr.mxu0 0.0
    %1394 = vmatpush1.msra.mxu0 0.0
    %1395 = vmatprep.subr.mxu0 0.0
    %1396 = vmatpush1.msra.mxu0 0.0
    %1397 = vmatprep.subr.mxu0 0.0
    %1398 = vmatpush1.msra.mxu0 0.0
    %1399 = vmatprep.subr.mxu0 0.0
    %1400 = vmatpush1.msra.mxu0 0.0
    %1401 = vmatprep.mubr.f32.mxu0 0.0
    %1402 = vmatmul.mubr.f32.gmra.mrb[0].mxu0 %v1335
    %v1403 = vpop.f32.mrb[0].mxu0
    %v1404 = vadd.f32 0.0, %v1403
    %v1405 = vpop.f32.mrb[0].mxu0
    %1406 = vdwg.mxu0
    %1407 = vrot.lane.b32.xlu0 %v410, 48
    %v1408 = vpop.permute.xlu0 %1407
    %1409 = vrot.lane.b32.xlu0 %v415, 48
    %v1410 = vpop.permute.xlu0 %1409
    %v1414 = vsel %vm599, %v1327, 0
    %1416 = vmatprep.subr.mxu0 0.0
    %1417 = vmatpush1.msra.mxu0 %v1408
    %1418 = vmatprep.subr.mxu0 0.0
    %1419 = vmatpush1.msra.mxu0 %v1410
    %1420 = vmatprep.subr.mxu0 0.0
    %1421 = vmatpush1.msra.mxu0 0.0
    %1422 = vmatprep.subr.mxu0 0.0
    %1423 = vmatpush1.msra.mxu0 0.0
    %1424 = vmatprep.subr.mxu0 0.0
    %1425 = vmatpush1.msra.mxu0 0.0
    %1426 = vmatprep.subr.mxu0 0.0
    %1427 = vmatpush1.msra.mxu0 0.0
    %1428 = vmatprep.subr.mxu0 0.0
    %1429 = vmatpush1.msra.mxu0 0.0
    %1430 = vmatprep.subr.mxu0 0.0
    %1431 = vmatpush1.msra.mxu0 0.0
    %1432 = vmatprep.subr.mxu0 0.0
    %1433 = vmatpush1.msra.mxu0 0.0
    %1434 = vmatprep.subr.mxu0 0.0
    %1435 = vmatpush1.msra.mxu0 0.0
    %1436 = vmatprep.subr.mxu0 0.0
    %1437 = vmatpush1.msra.mxu0 0.0
    %1438 = vmatprep.subr.mxu0 0.0
    %1439 = vmatpush1.msra.mxu0 0.0
    %1440 = vmatprep.subr.mxu0 0.0
    %1441 = vmatpush1.msra.mxu0 0.0
    %1442 = vmatprep.subr.mxu0 0.0
    %1443 = vmatpush1.msra.mxu0 0.0
    %1444 = vmatprep.subr.mxu0 0.0
    %1445 = vmatpush1.msra.mxu0 0.0
    %1446 = vmatprep.subr.mxu0 0.0
    %1447 = vmatpush1.msra.mxu0 0.0
    %1448 = vmatprep.subr.mxu0 0.0
    %1449 = vmatpush1.msra.mxu0 0.0
    %1450 = vmatprep.subr.mxu0 0.0
    %1451 = vmatpush1.msra.mxu0 0.0
    %1452 = vmatprep.subr.mxu0 0.0
    %1453 = vmatpush1.msra.mxu0 0.0
    %1454 = vmatprep.subr.mxu0 0.0
    %1455 = vmatpush1.msra.mxu0 0.0
    %1456 = vmatprep.subr.mxu0 0.0
    %1457 = vmatpush1.msra.mxu0 0.0
    %1458 = vmatprep.subr.mxu0 0.0
    %1459 = vmatpush1.msra.mxu0 0.0
    %1460 = vmatprep.subr.mxu0 0.0
    %1461 = vmatpush1.msra.mxu0 0.0
    %1462 = vmatprep.subr.mxu0 0.0
    %1463 = vmatpush1.msra.mxu0 0.0
    %1464 = vmatprep.subr.mxu0 0.0
    %1465 = vmatpush1.msra.mxu0 0.0
    %1466 = vmatprep.subr.mxu0 0.0
    %1467 = vmatpush1.msra.mxu0 0.0
    %1468 = vmatprep.subr.mxu0 0.0
    %1469 = vmatpush1.msra.mxu0 0.0
    %1470 = vmatprep.subr.mxu0 0.0
    %1471 = vmatpush1.msra.mxu0 0.0
    %1472 = vmatprep.subr.mxu0 0.0
    %1473 = vmatpush1.msra.mxu0 0.0
    %1474 = vmatprep.subr.mxu0 0.0
    %1475 = vmatpush1.msra.mxu0 0.0
    %1476 = vmatprep.subr.mxu0 0.0
    %1477 = vmatpush1.msra.mxu0 0.0
    %1478 = vmatprep.subr.mxu0 0.0
    %1479 = vmatpush1.msra.mxu0 0.0
    %1480 = vmatprep.mubr.f32.mxu0 0.0
    %1481 = vmatmul.mubr.f32.gmra.mrb[0].mxu0 %v1414
    %v1482 = vpop.f32.mrb[0].mxu0
    %v1483 = vadd.f32 0.0, %v1482
    %v1484 = vpop.f32.mrb[0].mxu0
    %1485 = vdwg.mxu0
    %1486 = vrot.lane.b32.xlu0 %v405, 104
    %v1487 = vpop.permute.xlu0 %1486
    %1488 = vrot.lane.b32.xlu0 %v400, 72
    %v1489 = vpop.permute.xlu0 %1488
    %1490 = vrot.lane.b32.xlu0 %v405, 72
    %v1491 = vpop.permute.xlu0 %1490
    %v1492 = vsel %vm440, %v1487, 0
    %v1494 = vsel %vm440, %v1489, 0
    %v1496 = vsel %vm440, %v1491, 0
    %1498 = vmatprep.subr.mxu0 0.0
    %1499 = vmatpush1.xpose.msra.mxu0 %v1494
    %1500 = vmatprep.subr.mxu0 0.0
    %1501 = vmatpush1.xpose.msra.mxu0 %v1496
    %1502 = vmatprep.subr.mxu0 0.0
    %1503 = vmatpush1.xpose.msra.mxu0 0.0
    %1504 = vmatprep.subr.mxu0 0.0
    %1505 = vmatpush1.xpose.msra.mxu0 0.0
    %1506 = vmatprep.subr.mxu0 0.0
    %1507 = vmatpush1.xpose.msra.mxu0 0.0
    %1508 = vmatprep.subr.mxu0 0.0
    %1509 = vmatpush1.xpose.msra.mxu0 0.0
    %1510 = vmatprep.subr.mxu0 0.0
    %1511 = vmatpush1.xpose.msra.mxu0 0.0
    %1512 = vmatprep.subr.mxu0 0.0
    %1513 = vmatpush1.xpose.msra.mxu0 0.0
    %1514 = vmatprep.subr.mxu0 0.0
    %1515 = vmatpush1.xpose.msra.mxu0 0.0
    %1516 = vmatprep.subr.mxu0 0.0
    %1517 = vmatpush1.xpose.msra.mxu0 0.0
    %1518 = vmatprep.subr.mxu0 0.0
    %1519 = vmatpush1.xpose.msra.mxu0 0.0
    %1520 = vmatprep.subr.mxu0 0.0
    %1521 = vmatpush1.xpose.msra.mxu0 0.0
    %1522 = vmatprep.subr.mxu0 0.0
    %1523 = vmatpush1.xpose.msra.mxu0 0.0
    %1524 = vmatprep.subr.mxu0 0.0
    %1525 = vmatpush1.xpose.msra.mxu0 0.0
    %1526 = vmatprep.subr.mxu0 0.0
    %1527 = vmatpush1.xpose.msra.mxu0 0.0
    %1528 = vmatprep.subr.mxu0 0.0
    %1529 = vmatpush1.xpose.msra.mxu0 0.0
    %1530 = vmatprep.subr.mxu0 0.0
    %1531 = vmatpush1.xpose.msra.mxu0 0.0
    %1532 = vmatprep.subr.mxu0 0.0
    %1533 = vmatpush1.xpose.msra.mxu0 0.0
    %1534 = vmatprep.subr.mxu0 0.0
    %1535 = vmatpush1.xpose.msra.mxu0 0.0
    %1536 = vmatprep.subr.mxu0 0.0
    %1537 = vmatpush1.xpose.msra.mxu0 0.0
    %1538 = vmatprep.subr.mxu0 0.0
    %1539 = vmatpush1.xpose.msra.mxu0 0.0
    %1540 = vmatprep.subr.mxu0 0.0
    %1541 = vmatpush1.xpose.msra.mxu0 0.0
    %1542 = vmatprep.subr.mxu0 0.0
    %1543 = vmatpush1.xpose.msra.mxu0 0.0
    %1544 = vmatprep.subr.mxu0 0.0
    %1545 = vmatpush1.xpose.msra.mxu0 0.0
    %1546 = vmatprep.subr.mxu0 0.0
    %1547 = vmatpush1.xpose.msra.mxu0 0.0
    %1548 = vmatprep.subr.mxu0 0.0
    %1549 = vmatpush1.xpose.msra.mxu0 0.0
    %1550 = vmatprep.subr.mxu0 0.0
    %1551 = vmatpush1.xpose.msra.mxu0 0.0
    %1552 = vmatprep.subr.mxu0 0.0
    %1553 = vmatpush1.xpose.msra.mxu0 0.0
    %1554 = vmatprep.subr.mxu0 0.0
    %1555 = vmatpush1.xpose.msra.mxu0 0.0
    %1556 = vmatprep.subr.mxu0 0.0
    %1557 = vmatpush1.xpose.msra.mxu0 0.0
    %1558 = vmatprep.subr.mxu0 0.0
    %1559 = vmatpush1.xpose.msra.mxu0 0.0
    %1560 = vmatprep.subr.mxu0 0.0
    %1561 = vmatpush1.xpose.msra.mxu0 0.0
    %1562 = vmatprep.mubr.f32.mxu0 0.0
    %1563 = vmatmul.mubr.f32.gmra.mrb[0].mxu0 %v1492
    %v1564 = vpop.f32.mrb[0].mxu0
    %v1565 = vadd.f32 %v427, %v1564
    %v1566 = vpop.f32.mrb[0].mxu0
    %1567 = vdwg.mxu0
    %1568 = vrot.lane.b32.xlu0 %v415, 104
    %v1569 = vpop.permute.xlu0 %1568
    %1570 = vrot.lane.b32.xlu0 %v410, 72
    %v1571 = vpop.permute.xlu0 %1570
    %1572 = vrot.lane.b32.xlu0 %v415, 72
    %v1573 = vpop.permute.xlu0 %1572
    %v1574 = vsel %vm440, %v1569, 0
    %v1576 = vsel %vm440, %v1571, 0
    %v1578 = vsel %vm440, %v1573, 0
    %1580 = vmatprep.subr.mxu0 0.0
    %1581 = vmatpush1.xpose.msra.mxu0 %v1576
    %1582 = vmatprep.subr.mxu0 0.0
    %1583 = vmatpush1.xpose.msra.mxu0 %v1578
    %1584 = vmatprep.subr.mxu0 0.0
    %1585 = vmatpush1.xpose.msra.mxu0 0.0
    %1586 = vmatprep.subr.mxu0 0.0
    %1587 = vmatpush1.xpose.msra.mxu0 0.0
    %1588 = vmatprep.subr.mxu0 0.0
    %1589 = vmatpush1.xpose.msra.mxu0 0.0
    %1590 = vmatprep.subr.mxu0 0.0
    %1591 = vmatpush1.xpose.msra.mxu0 0.0
    %1592 = vmatprep.subr.mxu0 0.0
    %1593 = vmatpush1.xpose.msra.mxu0 0.0
    %1594 = vmatprep.subr.mxu0 0.0
    %1595 = vmatpush1.xpose.msra.mxu0 0.0
    %1596 = vmatprep.subr.mxu0 0.0
    %1597 = vmatpush1.xpose.msra.mxu0 0.0
    %1598 = vmatprep.subr.mxu0 0.0
    %1599 = vmatpush1.xpose.msra.mxu0 0.0
    %1600 = vmatprep.subr.mxu0 0.0
    %1601 = vmatpush1.xpose.msra.mxu0 0.0
    %1602 = vmatprep.subr.mxu0 0.0
    %1603 = vmatpush1.xpose.msra.mxu0 0.0
    %1604 = vmatprep.subr.mxu0 0.0
    %1605 = vmatpush1.xpose.msra.mxu0 0.0
    %1606 = vmatprep.subr.mxu0 0.0
    %1607 = vmatpush1.xpose.msra.mxu0 0.0
    %1608 = vmatprep.subr.mxu0 0.0
    %1609 = vmatpush1.xpose.msra.mxu0 0.0
    %1610 = vmatprep.subr.mxu0 0.0
    %1611 = vmatpush1.xpose.msra.mxu0 0.0
    %1612 = vmatprep.subr.mxu0 0.0
    %1613 = vmatpush1.xpose.msra.mxu0 0.0
    %1614 = vmatprep.subr.mxu0 0.0
    %1615 = vmatpush1.xpose.msra.mxu0 0.0
    %1616 = vmatprep.subr.mxu0 0.0
    %1617 = vmatpush1.xpose.msra.mxu0 0.0
    %1618 = vmatprep.subr.mxu0 0.0
    %1619 = vmatpush1.xpose.msra.mxu0 0.0
    %1620 = vmatprep.subr.mxu0 0.0
    %1621 = vmatpush1.xpose.msra.mxu0 0.0
    %1622 = vmatprep.subr.mxu0 0.0
    %1623 = vmatpush1.xpose.msra.mxu0 0.0
    %1624 = vmatprep.subr.mxu0 0.0
    %1625 = vmatpush1.xpose.msra.mxu0 0.0
    %1626 = vmatprep.subr.mxu0 0.0
    %1627 = vmatpush1.xpose.msra.mxu0 0.0
    %1628 = vmatprep.subr.mxu0 0.0
    %1629 = vmatpush1.xpose.msra.mxu0 0.0
    %1630 = vmatprep.subr.mxu0 0.0
    %1631 = vmatpush1.xpose.msra.mxu0 0.0
    %1632 = vmatprep.subr.mxu0 0.0
    %1633 = vmatpush1.xpose.msra.mxu0 0.0
    %1634 = vmatprep.subr.mxu0 0.0
    %1635 = vmatpush1.xpose.msra.mxu0 0.0
    %1636 = vmatprep.subr.mxu0 0.0
    %1637 = vmatpush1.xpose.msra.mxu0 0.0
    %1638 = vmatprep.subr.mxu0 0.0
    %1639 = vmatpush1.xpose.msra.mxu0 0.0
    %1640 = vmatprep.subr.mxu0 0.0
    %1641 = vmatpush1.xpose.msra.mxu0 0.0
    %1642 = vmatprep.subr.mxu0 0.0
    %1643 = vmatpush1.xpose.msra.mxu0 0.0
    %1644 = vmatprep.mubr.f32.mxu0 0.0
    %1645 = vmatmul.mubr.f32.gmra.mrb[0].mxu0 %v1574
    %v1646 = vpop.f32.mrb[0].mxu0
    %v1647 = vadd.f32 %v431, %v1646
    %v1648 = vpop.f32.mrb[0].mxu0
    %1649 = vdwg.mxu0
    %v1650 = vsel %vm599, %v1565, -inf
    %1651 = vmax.xlane.f32.xlu0 %v1650
    %v1652 = vpop.xlane.xlu0 %1651
    %v1653 = vsel %vm599, %v1647, -inf
    %1654 = vmax.xlane.f32.xlu0 %v1653
    %v1655 = vpop.xlane.xlu0 %1654
    %v1656 = vsub.f32 %v1565, %v1652
    %v1657 = vsub.f32 %v1647, %v1655
    %v1658 = vmul.f32 %v1656, 1.442695
    %v1659 = vpow.pop %v1658
    %v1660 = vmul.f32 %v1657, 1.442695
    %v1661 = vpow.pop %v1660
    %v1662 = vsel %vm599, %v1659, 0.0
    %1663 = vadd.xlane.f32.xlu0 %v1662
    %v1664 = vpop.xlane.xlu0 %1663
    %v1665 = vsel %vm599, %v1661, 0.0
    %1666 = vadd.xlane.f32.xlu0 %v1665
    %v1667 = vpop.xlane.xlu0 %1666
    %v1668 = vrcp.pop %v1664
    %v1669 = vrcp.pop %v1667
    %v1670 = vmul.f32 %v1659, %v1668
    %v1671 = vmul.f32 %v1661, %v1669
    %v1672 = vmul.f32 %v1670, %v627
    %v1673 = vmul.f32 %v1671, %v631
    %1674 = vrot.lane.b32.xlu0 %v400, 40
    %v1675 = vpop.permute.xlu0 %1674
    %1676 = vrot.lane.b32.xlu0 %v405, 40
    %v1677 = vpop.permute.xlu0 %1676
    %v1681 = vsel %vm599, %v1672, 0
    %1683 = vmatprep.subr.mxu0 0.0
    %1684 = vmatpush1.msra.mxu0 %v1675
    %1685 = vmatprep.subr.mxu0 0.0
    %1686 = vmatpush1.msra.mxu0 %v1677
    %1687 = vmatprep.subr.mxu0 0.0
    %1688 = vmatpush1.msra.mxu0 0.0
    %1689 = vmatprep.subr.mxu0 0.0
    %1690 = vmatpush1.msra.mxu0 0.0
    %1691 = vmatprep.subr.mxu0 0.0
    %1692 = vmatpush1.msra.mxu0 0.0
    %1693 = vmatprep.subr.mxu0 0.0
    %1694 = vmatpush1.msra.mxu0 0.0
    %1695 = vmatprep.subr.mxu0 0.0
    %1696 = vmatpush1.msra.mxu0 0.0
    %1697 = vmatprep.subr.mxu0 0.0
    %1698 = vmatpush1.msra.mxu0 0.0
    %1699 = vmatprep.subr.mxu0 0.0
    %1700 = vmatpush1.msra.mxu0 0.0
    %1701 = vmatprep.subr.mxu0 0.0
    %1702 = vmatpush1.msra.mxu0 0.0
    %1703 = vmatprep.subr.mxu0 0.0
    %1704 = vmatpush1.msra.mxu0 0.0
    %1705 = vmatprep.subr.mxu0 0.0
    %1706 = vmatpush1.msra.mxu0 0.0
    %1707 = vmatprep.subr.mxu0 0.0
    %1708 = vmatpush1.msra.mxu0 0.0
    %1709 = vmatprep.subr.mxu0 0.0
    %1710 = vmatpush1.msra.mxu0 0.0
    %1711 = vmatprep.subr.mxu0 0.0
    %1712 = vmatpush1.msra.mxu0 0.0
    %1713 = vmatprep.subr.mxu0 0.0
    %1714 = vmatpush1.msra.mxu0 0.0
    %1715 = vmatprep.subr.mxu0 0.0
    %1716 = vmatpush1.msra.mxu0 0.0
    %1717 = vmatprep.subr.mxu0 0.0
    %1718 = vmatpush1.msra.mxu0 0.0
    %1719 = vmatprep.subr.mxu0 0.0
    %1720 = vmatpush1.msra.mxu0 0.0
    %1721 = vmatprep.subr.mxu0 0.0
    %1722 = vmatpush1.msra.mxu0 0.0
    %1723 = vmatprep.subr.mxu0 0.0
    %1724 = vmatpush1.msra.mxu0 0.0
    %1725 = vmatprep.subr.mxu0 0.0
    %1726 = vmatpush1.msra.mxu0 0.0
    %1727 = vmatprep.subr.mxu0 0.0
    %1728 = vmatpush1.msra.mxu0 0.0
    %1729 = vmatprep.subr.mxu0 0.0
    %1730 = vmatpush1.msra.mxu0 0.0
    %1731 = vmatprep.subr.mxu0 0.0
    %1732 = vmatpush1.msra.mxu0 0.0
    %1733 = vmatprep.subr.mxu0 0.0
    %1734 = vmatpush1.msra.mxu0 0.0
    %1735 = vmatprep.subr.mxu0 0.0
    %1736 = vmatpush1.msra.mxu0 0.0
    %1737 = vmatprep.subr.mxu0 0.0
    %1738 = vmatpush1.msra.mxu0 0.0
    %1739 = vmatprep.subr.mxu0 0.0
    %1740 = vmatpush1.msra.mxu0 0.0
    %1741 = vmatprep.subr.mxu0 0.0
    %1742 = vmatpush1.msra.mxu0 0.0
    %1743 = vmatprep.subr.mxu0 0.0
    %1744 = vmatpush1.msra.mxu0 0.0
    %1745 = vmatprep.subr.mxu0 0.0
    %1746 = vmatpush1.msra.mxu0 0.0
    %1747 = vmatprep.mubr.f32.mxu0 0.0
    %1748 = vmatmul.mubr.f32.gmra.mrb[0].mxu0 %v1681
    %v1749 = vpop.f32.mrb[0].mxu0
    %v1750 = vadd.f32 0.0, %v1749
    %v1751 = vpop.f32.mrb[0].mxu0
    %1752 = vdwg.mxu0
    %1753 = vrot.lane.b32.xlu0 %v410, 40
    %v1754 = vpop.permute.xlu0 %1753
    %1755 = vrot.lane.b32.xlu0 %v415, 40
    %v1756 = vpop.permute.xlu0 %1755
    %v1760 = vsel %vm599, %v1673, 0
    %1762 = vmatprep.subr.mxu0 0.0
    %1763 = vmatpush1.msra.mxu0 %v1754
    %1764 = vmatprep.subr.mxu0 0.0
    %1765 = vmatpush1.msra.mxu0 %v1756
    %1766 = vmatprep.subr.mxu0 0.0
    %1767 = vmatpush1.msra.mxu0 0.0
    %1768 = vmatprep.subr.mxu0 0.0
    %1769 = vmatpush1.msra.mxu0 0.0
    %1770 = vmatprep.subr.mxu0 0.0
    %1771 = vmatpush1.msra.mxu0 0.0
    %1772 = vmatprep.subr.mxu0 0.0
    %1773 = vmatpush1.msra.mxu0 0.0
    %1774 = vmatprep.subr.mxu0 0.0
    %1775 = vmatpush1.msra.mxu0 0.0
    %1776 = vmatprep.subr.mxu0 0.0
    %1777 = vmatpush1.msra.mxu0 0.0
    %1778 = vmatprep.subr.mxu0 0.0
    %1779 = vmatpush1.msra.mxu0 0.0
    %1780 = vmatprep.subr.mxu0 0.0
    %1781 = vmatpush1.msra.mxu0 0.0
    %1782 = vmatprep.subr.mxu0 0.0
    %1783 = vmatpush1.msra.mxu0 0.0
    %1784 = vmatprep.subr.mxu0 0.0
    %1785 = vmatpush1.msra.mxu0 0.0
    %1786 = vmatprep.subr.mxu0 0.0
    %1787 = vmatpush1.msra.mxu0 0.0
    %1788 = vmatprep.subr.mxu0 0.0
    %1789 = vmatpush1.msra.mxu0 0.0
    %1790 = vmatprep.subr.mxu0 0.0
    %1791 = vmatpush1.msra.mxu0 0.0
    %1792 = vmatprep.subr.mxu0 0.0
    %1793 = vmatpush1.msra.mxu0 0.0
    %1794 = vmatprep.subr.mxu0 0.0
    %1795 = vmatpush1.msra.mxu0 0.0
    %1796 = vmatprep.subr.mxu0 0.0
    %1797 = vmatpush1.msra.mxu0 0.0
    %1798 = vmatprep.subr.mxu0 0.0
    %1799 = vmatpush1.msra.mxu0 0.0
    %1800 = vmatprep.subr.mxu0 0.0
    %1801 = vmatpush1.msra.mxu0 0.0
    %1802 = vmatprep.subr.mxu0 0.0
    %1803 = vmatpush1.msra.mxu0 0.0
    %1804 = vmatprep.subr.mxu0 0.0
    %1805 = vmatpush1.msra.mxu0 0.0
    %1806 = vmatprep.subr.mxu0 0.0
    %1807 = vmatpush1.msra.mxu0 0.0
    %1808 = vmatprep.subr.mxu0 0.0
    %1809 = vmatpush1.msra.mxu0 0.0
    %1810 = vmatprep.subr.mxu0 0.0
    %1811 = vmatpush1.msra.mxu0 0.0
    %1812 = vmatprep.subr.mxu0 0.0
    %1813 = vmatpush1.msra.mxu0 0.0
    %1814 = vmatprep.subr.mxu0 0.0
    %1815 = vmatpush1.msra.mxu0 0.0
    %1816 = vmatprep.subr.mxu0 0.0
    %1817 = vmatpush1.msra.mxu0 0.0
    %1818 = vmatprep.subr.mxu0 0.0
    %1819 = vmatpush1.msra.mxu0 0.0
    %1820 = vmatprep.subr.mxu0 0.0
    %1821 = vmatpush1.msra.mxu0 0.0
    %1822 = vmatprep.subr.mxu0 0.0
    %1823 = vmatpush1.msra.mxu0 0.0
    %1824 = vmatprep.subr.mxu0 0.0
    %1825 = vmatpush1.msra.mxu0 0.0
    %1826 = vmatprep.mubr.f32.mxu0 0.0
    %1827 = vmatmul.mubr.f32.gmra.mrb[0].mxu0 %v1760
    %v1828 = vpop.f32.mrb[0].mxu0
    %v1829 = vadd.f32 0.0, %v1828
    %v1830 = vpop.f32.mrb[0].mxu0
    %1831 = vdwg.mxu0
    %1834 = vrot.lane.b32.xlu0 %v1058, 8
    %v1835 = vpop.permute.xlu0 %1834
    %1836 = vrot.lane.b32.xlu0 %v1137, 8
    %v1837 = vpop.permute.xlu0 %1836
    %1842 = vrot.lane.b32.xlu0 %v1404, 16
    %v1843 = vpop.permute.xlu0 %1842
    %1844 = vrot.lane.b32.xlu0 %v1483, 16
    %v1845 = vpop.permute.xlu0 %1844
    %1850 = vrot.lane.b32.xlu0 %v1750, 24
    %v1851 = vpop.permute.xlu0 %1850
    %1852 = vrot.lane.b32.xlu0 %v1829, 24
    %v1853 = vpop.permute.xlu0 %1852
    %v1856 = vsel %vm440, %v712, %v1835
    %v1857 = vsel %vm440, %v791, %v1837
    %v1858 = vsel %vm599, %v1856, %v1843
    %v1859 = vsel %vm599, %v1857, %v1845
    %vm1860 = vcmask 195584
    %v1861 = vsel %vm1860, %v1858, %v1851
    %v1862 = vsel %vm1860, %v1859, %v1853
    %v1863 = vld [vmem:[%s5] sm:$0xff]
    %v1864 = vld [vmem:[%s5 + $0x8] sm:$0xff]
    %v1865 = vld [vmem:[%s5 + $0x10] sm:$0xff]
    %v1866 = vld [vmem:[%s5 + $0x18] sm:$0xff]
    %v1867 = vlaneseq
    %v1868 = vshrl.u32 %v1867, 7
    %v1869 = vsub.s32 6, %v1868
    %v1870 = vrot.slane %v36, %v1869
    %v1872 = vsel %vm58, %v1861, 0
    %v1875 = vsel %vm58, %v1862, 0
    %1877 = vmatprep.subr.mxu0 0.0
    %1878 = vmatpush1.msra.mxu0 %v1863
    %1879 = vmatprep.subr.mxu0 0.0
    %1880 = vmatpush1.msra.mxu0 %v1864
    %1881 = vmatprep.subr.mxu0 0.0
    %1882 = vmatpush1.msra.mxu0 %v1865
    %1883 = vmatprep.subr.mxu0 0.0
    %1884 = vmatpush1.msra.mxu0 %v1866
    %1885 = vmatprep.subr.mxu0 0.0
    %1886 = vmatpush1.msra.mxu0 0.0
    %1887 = vmatprep.subr.mxu0 0.0
    %1888 = vmatpush1.msra.mxu0 0.0
    %1889 = vmatprep.subr.mxu0 0.0
    %1890 = vmatpush1.msra.mxu0 0.0
    %1891 = vmatprep.subr.mxu0 0.0
    %1892 = vmatpush1.msra.mxu0 0.0
    %1893 = vmatprep.subr.mxu0 0.0
    %1894 = vmatpush1.msra.mxu0 0.0
    %1895 = vmatprep.subr.mxu0 0.0
    %1896 = vmatpush1.msra.mxu0 0.0
    %1897 = vmatprep.subr.mxu0 0.0
    %1898 = vmatpush1.msra.mxu0 0.0
    %1899 = vmatprep.subr.mxu0 0.0
    %1900 = vmatpush1.msra.mxu0 0.0
    %1901 = vmatprep.subr.mxu0 0.0
    %1902 = vmatpush1.msra.mxu0 0.0
    %1903 = vmatprep.subr.mxu0 0.0
    %1904 = vmatpush1.msra.mxu0 0.0
    %1905 = vmatprep.subr.mxu0 0.0
    %1906 = vmatpush1.msra.mxu0 0.0
    %1907 = vmatprep.subr.mxu0 0.0
    %1908 = vmatpush1.msra.mxu0 0.0
    %1909 = vmatprep.subr.mxu0 0.0
    %1910 = vmatpush1.msra.mxu0 0.0
    %1911 = vmatprep.subr.mxu0 0.0
    %1912 = vmatpush1.msra.mxu0 0.0
    %1913 = vmatprep.subr.mxu0 0.0
    %1914 = vmatpush1.msra.mxu0 0.0
    %1915 = vmatprep.subr.mxu0 0.0
    %1916 = vmatpush1.msra.mxu0 0.0
    %1917 = vmatprep.subr.mxu0 0.0
    %1918 = vmatpush1.msra.mxu0 0.0
    %1919 = vmatprep.subr.mxu0 0.0
    %1920 = vmatpush1.msra.mxu0 0.0
    %1921 = vmatprep.subr.mxu0 0.0
    %1922 = vmatpush1.msra.mxu0 0.0
    %1923 = vmatprep.subr.mxu0 0.0
    %1924 = vmatpush1.msra.mxu0 0.0
    %1925 = vmatprep.subr.mxu0 0.0
    %1926 = vmatpush1.msra.mxu0 0.0
    %1927 = vmatprep.subr.mxu0 0.0
    %1928 = vmatpush1.msra.mxu0 0.0
    %1929 = vmatprep.subr.mxu0 0.0
    %1930 = vmatpush1.msra.mxu0 0.0
    %1931 = vmatprep.subr.mxu0 0.0
    %1932 = vmatpush1.msra.mxu0 0.0
    %1933 = vmatprep.subr.mxu0 0.0
    %1934 = vmatpush1.msra.mxu0 0.0
    %1935 = vmatprep.subr.mxu0 0.0
    %1936 = vmatpush1.msra.mxu0 0.0
    %1937 = vmatprep.subr.mxu0 0.0
    %1938 = vmatpush1.msra.mxu0 0.0
    %1939 = vmatprep.subr.mxu0 0.0
    %1940 = vmatpush1.msra.mxu0 0.0
    %1941 = vmatprep.mubr.f32.mxu0 0.0
    %1942 = vmatmul.mubr.f32.gmra.mrb[0].mxu0 %v1872
    %v1943 = vpop.f32.mrb[0].mxu0
    %v1944 = vadd.f32 %v1870, %v1943
    %v1945 = vpop.f32.mrb[0].mxu0
    %1946 = vmatprep.mubr.f32.mxu0 0.0
    %1947 = vmatmul.mubr.f32.gmra.mrb[0].mxu0 %v1875
    %v1948 = vpop.f32.mrb[0].mxu0
    %v1949 = vadd.f32 %v1870, %v1948
    %v1950 = vpop.f32.mrb[0].mxu0
    %1951 = vdwg.mxu0
    %v1952 = vadd.f32 %v273, %v1944
    %v1953 = vadd.f32 %v274, %v1949
    %v1954 = vsel %vm58, %v1952, 0.0
    %1955 = vadd.xlane.f32.xlu0 %v1954
    %v1956 = vpop.xlane.xlu0 %1955
    %v1957 = vsel %vm58, %v1953, 0.0
    %1958 = vadd.xlane.f32.xlu0 %v1957
    %v1959 = vpop.xlane.xlu0 %1958
    %v1960 = vmul.f32 %v1956, %v65
    %v1961 = vmul.f32 %v1959, %v65
    %v1962 = vsub.f32 %v1952, %v1960
    %v1963 = vsub.f32 %v1953, %v1961
    %v1964 = vmul.f32 %v1962, %v1962
    %v1965 = vmul.f32 %v1963, %v1963
    %v1966 = vsel %vm58, %v1964, 0.0
    %1967 = vadd.xlane.f32.xlu0 %v1966
    %v1968 = vpop.xlane.xlu0 %1967
    %v1969 = vsel %vm58, %v1965, 0.0
    %1970 = vadd.xlane.f32.xlu0 %v1969
    %v1971 = vpop.xlane.xlu0 %1970
    %v1972 = vmul.f32 %v1968, %v65
    %v1973 = vmul.f32 %v1971, %v65
    %v1974 = vadd.f32 %v1972, 1e-12
    %v1975 = vadd.f32 %v1973, 1e-12
    %v1976 = vrsqrt.pop %v1974
    %v1977 = vrsqrt.pop %v1975
    %v1978 = vmul.f32 %v1962, %v1976
    %v1979 = vmul.f32 %v1963, %v1977
    %v1980 = vlaneseq
    %v1981 = vshrl.u32 %v1980, 7
    %v1982 = vsub.s32 4, %v1981
    %v1983 = vrot.slane %v36, %v1982
    %v1984 = vmul.f32 %v1978, %v1983
    %v1985 = vmul.f32 %v1979, %v1983
    %v1986 = vlaneseq
    %v1987 = vshrl.u32 %v1986, 7
    %v1988 = vsub.s32 5, %v1987
    %v1989 = vrot.slane %v36, %v1988
    %v1990 = vadd.f32 %v1984, %v1989
    %v1991 = vadd.f32 %v1985, %v1989
    %v1992 = vlaneseq
    %v1993 = vshrl.u32 %v1992, 7
    %v1994 = vsub.s32 3, %v1993
    %v1995 = vrot.slane %v37, %v1994
    %2000 = vrot.lane.b32.xlu0 %v38, 64
    %v2001 = vpop.permute.xlu0 %2000
    %2002 = vrot.lane.b32.xlu0 %v39, 64
    %v2003 = vpop.permute.xlu0 %2002
    %2004 = vrot.lane.b32.xlu0 %v40, 64
    %v2005 = vpop.permute.xlu0 %2004
    %2006 = vrot.lane.b32.xlu0 %v41, 64
    %v2007 = vpop.permute.xlu0 %2006
    %v2013 = vsel %vm58, %v1990, 0
    %v2016 = vsel %vm58, %v1991, 0
    %2018 = vmatprep.subr.mxu0 0.0
    %2019 = vmatpush1.msra.mxu0 %v2001
    %2020 = vmatprep.subr.mxu0 0.0
    %2021 = vmatpush1.msra.mxu0 %v2003
    %2022 = vmatprep.subr.mxu0 0.0
    %2023 = vmatpush1.msra.mxu0 %v2005
    %2024 = vmatprep.subr.mxu0 0.0
    %2025 = vmatpush1.msra.mxu0 %v2007
    %2026 = vmatprep.subr.mxu0 0.0
    %2027 = vmatpush1.msra.mxu0 0.0
    %2028 = vmatprep.subr.mxu0 0.0
    %2029 = vmatpush1.msra.mxu0 0.0
    %2030 = vmatprep.subr.mxu0 0.0
    %2031 = vmatpush1.msra.mxu0 0.0
    %2032 = vmatprep.subr.mxu0 0.0
    %2033 = vmatpush1.msra.mxu0 0.0
    %2034 = vmatprep.subr.mxu0 0.0
    %2035 = vmatpush1.msra.mxu0 0.0
    %2036 = vmatprep.subr.mxu0 0.0
    %2037 = vmatpush1.msra.mxu0 0.0
    %2038 = vmatprep.subr.mxu0 0.0
    %2039 = vmatpush1.msra.mxu0 0.0
    %2040 = vmatprep.subr.mxu0 0.0
    %2041 = vmatpush1.msra.mxu0 0.0
    %2042 = vmatprep.subr.mxu0 0.0
    %2043 = vmatpush1.msra.mxu0 0.0
    %2044 = vmatprep.subr.mxu0 0.0
    %2045 = vmatpush1.msra.mxu0 0.0
    %2046 = vmatprep.subr.mxu0 0.0
    %2047 = vmatpush1.msra.mxu0 0.0
    %2048 = vmatprep.subr.mxu0 0.0
    %2049 = vmatpush1.msra.mxu0 0.0
    %2050 = vmatprep.subr.mxu0 0.0
    %2051 = vmatpush1.msra.mxu0 0.0
    %2052 = vmatprep.subr.mxu0 0.0
    %2053 = vmatpush1.msra.mxu0 0.0
    %2054 = vmatprep.subr.mxu0 0.0
    %2055 = vmatpush1.msra.mxu0 0.0
    %2056 = vmatprep.subr.mxu0 0.0
    %2057 = vmatpush1.msra.mxu0 0.0
    %2058 = vmatprep.subr.mxu0 0.0
    %2059 = vmatpush1.msra.mxu0 0.0
    %2060 = vmatprep.subr.mxu0 0.0
    %2061 = vmatpush1.msra.mxu0 0.0
    %2062 = vmatprep.subr.mxu0 0.0
    %2063 = vmatpush1.msra.mxu0 0.0
    %2064 = vmatprep.subr.mxu0 0.0
    %2065 = vmatpush1.msra.mxu0 0.0
    %2066 = vmatprep.subr.mxu0 0.0
    %2067 = vmatpush1.msra.mxu0 0.0
    %2068 = vmatprep.subr.mxu0 0.0
    %2069 = vmatpush1.msra.mxu0 0.0
    %2070 = vmatprep.subr.mxu0 0.0
    %2071 = vmatpush1.msra.mxu0 0.0
    %2072 = vmatprep.subr.mxu0 0.0
    %2073 = vmatpush1.msra.mxu0 0.0
    %2074 = vmatprep.subr.mxu0 0.0
    %2075 = vmatpush1.msra.mxu0 0.0
    %2076 = vmatprep.subr.mxu0 0.0
    %2077 = vmatpush1.msra.mxu0 0.0
    %2078 = vmatprep.subr.mxu0 0.0
    %2079 = vmatpush1.msra.mxu0 0.0
    %2080 = vmatprep.subr.mxu0 0.0
    %2081 = vmatpush1.msra.mxu0 0.0
    %2082 = vmatprep.mubr.f32.mxu0 0.0
    %2083 = vmatmul.mubr.f32.gmra.mrb[0].mxu0 %v2013
    %v2084 = vpop.f32.mrb[0].mxu0
    %v2085 = vadd.f32 %v1995, %v2084
    %v2086 = vpop.f32.mrb[0].mxu0
    %2087 = vmatprep.mubr.f32.mxu0 0.0
    %2088 = vmatmul.mubr.f32.gmra.mrb[0].mxu0 %v2016
    %v2089 = vpop.f32.mrb[0].mxu0
    %v2090 = vadd.f32 %v1995, %v2089
    %v2091 = vpop.f32.mrb[0].mxu0
    %2092 = vdwg.mxu0
    %v2093 = vmax.f32 %v2085, 0.0
    %v2094 = vmax.f32 %v2090, 0.0
    %v2095 = vlaneseq
    %v2096 = vshrl.u32 %v2095, 7
    %v2097 = vsub.s32 0, %v2096
    %v2098 = vrot.slane %v37, %v2097
    %v2100 = vsel %vm189, %v2093, 0
    %v2103 = vsel %vm189, %v2094, 0
    %2105 = vmatprep.subr.mxu0 0.0
    %2106 = vmatpush1.msra.mxu0 %v50
    %2107 = vmatprep.subr.mxu0 0.0
    %2108 = vmatpush1.msra.mxu0 %v51
    %2109 = vmatprep.subr.mxu0 0.0
    %2110 = vmatpush1.msra.mxu0 %v52
    %2111 = vmatprep.subr.mxu0 0.0
    %2112 = vmatpush1.msra.mxu0 %v53
    %2113 = vmatprep.subr.mxu0 0.0
    %2114 = vmatpush1.msra.mxu0 %v54
    %2115 = vmatprep.subr.mxu0 0.0
    %2116 = vmatpush1.msra.mxu0 %v55
    %2117 = vmatprep.subr.mxu0 0.0
    %2118 = vmatpush1.msra.mxu0 %v56
    %2119 = vmatprep.subr.mxu0 0.0
    %2120 = vmatpush1.msra.mxu0 %v57
    %2121 = vmatprep.subr.mxu0 0.0
    %2122 = vmatpush1.msra.mxu0 0.0
    %2123 = vmatprep.subr.mxu0 0.0
    %2124 = vmatpush1.msra.mxu0 0.0
    %2125 = vmatprep.subr.mxu0 0.0
    %2126 = vmatpush1.msra.mxu0 0.0
    %2127 = vmatprep.subr.mxu0 0.0
    %2128 = vmatpush1.msra.mxu0 0.0
    %2129 = vmatprep.subr.mxu0 0.0
    %2130 = vmatpush1.msra.mxu0 0.0
    %2131 = vmatprep.subr.mxu0 0.0
    %2132 = vmatpush1.msra.mxu0 0.0
    %2133 = vmatprep.subr.mxu0 0.0
    %2134 = vmatpush1.msra.mxu0 0.0
    %2135 = vmatprep.subr.mxu0 0.0
    %2136 = vmatpush1.msra.mxu0 0.0
    %2137 = vmatprep.subr.mxu0 0.0
    %2138 = vmatpush1.msra.mxu0 0.0
    %2139 = vmatprep.subr.mxu0 0.0
    %2140 = vmatpush1.msra.mxu0 0.0
    %2141 = vmatprep.subr.mxu0 0.0
    %2142 = vmatpush1.msra.mxu0 0.0
    %2143 = vmatprep.subr.mxu0 0.0
    %2144 = vmatpush1.msra.mxu0 0.0
    %2145 = vmatprep.subr.mxu0 0.0
    %2146 = vmatpush1.msra.mxu0 0.0
    %2147 = vmatprep.subr.mxu0 0.0
    %2148 = vmatpush1.msra.mxu0 0.0
    %2149 = vmatprep.subr.mxu0 0.0
    %2150 = vmatpush1.msra.mxu0 0.0
    %2151 = vmatprep.subr.mxu0 0.0
    %2152 = vmatpush1.msra.mxu0 0.0
    %2153 = vmatprep.subr.mxu0 0.0
    %2154 = vmatpush1.msra.mxu0 0.0
    %2155 = vmatprep.subr.mxu0 0.0
    %2156 = vmatpush1.msra.mxu0 0.0
    %2157 = vmatprep.subr.mxu0 0.0
    %2158 = vmatpush1.msra.mxu0 0.0
    %2159 = vmatprep.subr.mxu0 0.0
    %2160 = vmatpush1.msra.mxu0 0.0
    %2161 = vmatprep.subr.mxu0 0.0
    %2162 = vmatpush1.msra.mxu0 0.0
    %2163 = vmatprep.subr.mxu0 0.0
    %2164 = vmatpush1.msra.mxu0 0.0
    %2165 = vmatprep.subr.mxu0 0.0
    %2166 = vmatpush1.msra.mxu0 0.0
    %2167 = vmatprep.subr.mxu0 0.0
    %2168 = vmatpush1.msra.mxu0 0.0
    %2169 = vmatprep.mubr.f32.mxu0 0.0
    %2170 = vmatmul.mubr.f32.gmra.mrb[0].mxu0 %v2100
    %v2171 = vpop.f32.mrb[0].mxu0
    %v2172 = vadd.f32 %v2098, %v2171
    %v2173 = vpop.f32.mrb[0].mxu0
    %2174 = vmatprep.mubr.f32.mxu0 0.0
    %2175 = vmatmul.mubr.f32.gmra.mrb[0].mxu0 %v2103
    %v2176 = vpop.f32.mrb[0].mxu0
    %v2177 = vadd.f32 %v2098, %v2176
    %v2178 = vpop.f32.mrb[0].mxu0
    %2179 = vdwg.mxu0
    %v2180 = vmul.f32 %v2172, 0.5
    %v2181 = vmul.f32 %v2177, 0.5
    %v2182 = vadd.f32 %v1952, %v2180
    %v2183 = vadd.f32 %v1953, %v2181
    %2184 = vst.msk [vmem:[#allocation2] sm:$0xff] %vm58, %v2182
    %2185 = vst.msk [vmem:[#allocation2 + $0x8] sm:$0xff] %vm58, %v2183
    // Predicated region
    $region34: #{tpu_custom_call.1} parent=1 // pred_check
      _
    $region35: #{tpu_custom_call.1} parent=1 // pred_check_branch
      %2187 = sbr.rel (0) target = $region37
    $region36: #{tpu_custom_call.1} parent=1 // pred_region
      %s2189 = ssub.s32 256, 256
      %2190 = vsyncadd [#allocation3], %s2189
      %s2191 = sshll.u32 [#allocation2], 4
      %s2192 = int_to_ptr.vmem [resolvable:$true] %s2191
      %2197 = dma.vmem_to_hbm [thread:$0]  %s2192, 256, %s8, [#allocation3], 128, 128, 8
    $region37: #{tpu_custom_call.1} parent=1 // pred_fallthru
      _
    // Predicated region
    $region38: #{tpu_custom_call.1} parent=1 // pred_check
      _
    $region39: #{tpu_custom_call.1} parent=1 // pred_check_branch
      %2199 = sbr.rel (0) target = $region41
    $region40: #{tpu_custom_call.1} parent=1 // pred_region
      %2200 = dma.done [#allocation3], 256
    $region41: #{tpu_custom_call.1} parent=1 // pred_fallthru
      _
    %2201 = vsyncpa [#allocation3], 1

</llo_original>
